<compile_context>
chip_gen: v7x
topology: tpu7x:2x2x1
jax: 0.10.0
libtpu: 0.0.40
codegen_flags: <defaults>
</compile_context>

<pallas_src>
import functools

import jax
import jax.numpy as jnp
from jax.experimental import pallas as pl
from jax.experimental.pallas import tpu as pltpu

# Rows of the stacked per-lane parameter matrix (every row has length W*C).
_R_BN1_S, _R_BN1_B = 0, 1      # folded BatchNorm after conv1
_R_SBN_S, _R_SBN_B = 2, 3      # folded BatchNorm in seed predictor
_R_SB = 4                      # seed-predictor conv bias (scalar broadcast)
_R_CBN_S, _R_CBN_B = 5, 6      # folded BatchNorm in PointCA MLP (cb1 folded in)
_R_CB2 = 7                     # PointCA conv2 bias
_R_BN2_S, _R_BN2_B = 8, 9      # folded BatchNorm after conv2
_K_VEC = 10

_IN_EPS = 1e-3                 # nn.InstanceNorm2d(channel, eps=0.001)
_BN_EPS = 1e-5                 # nn.SyncBatchNorm default eps


def pointcn_kernel(x_ref, vec_ref, gsum_ref, w1_ref, sw_ref, cw1_ref, cw2_ref,
                   w2_ref, o_ref, *, precise):
    TB, H, WC = x_ref.shape
    WCIP = cw1_ref.shape[1]          # lane-padded W*Ci of the PointCA MLP
    N2 = TB * H

    x3 = x_ref[...]                  # (TB, H, W*C) f32, lane-dense
    vec = vec_ref[...]               # (_K_VEC, W*C) f32

    def mm(a2, w_ref_):
        lhs = a2 if precise else a2.astype(jnp.bfloat16)
        return jnp.dot(lhs, w_ref_[...], preferred_element_type=jnp.float32)

    def group_mean(a3):
        # Per-sample, per-channel mean over all H*W spatial positions,
        # returned broadcast back over the W lane groups:
        # sublane reduce over H + a tiny f32 matmul against the fixed
        # "sum over W groups and broadcast" matrix (1/(H*W) folded in).
        col = jnp.sum(a3, axis=1)                                   # (TB, WC)
        tot = jnp.dot(col, gsum_ref[...],
                      preferred_element_type=jnp.float32)           # (TB, WC)
        return tot[:, None, :]                                      # (TB,1,WC)

    def inorm(a3):
        # InstanceNorm2d(affine=False, eps=1e-3).
        m = group_mean(a3)
        d = a3 - m
        v = group_mean(d * d)
        return d * jax.lax.rsqrt(v + _IN_EPS)

    def bn_relu(a, srow, brow):
        # Folded eval-mode SyncBatchNorm + ReLU: one FMA + one max.
        return jnp.maximum(a * srow + brow, 0.0)

    # --- Conv1x1 -> InstanceNorm -> BatchNorm -> ReLU -----------------------
    # (conv bias is exactly cancelled by the following InstanceNorm.)
    t3 = mm(x3.reshape(N2, WC), w1_ref).reshape(TB, H, WC)
    t3 = bn_relu(inorm(t3), vec[_R_BN1_S], vec[_R_BN1_B])

    # --- PointCA(out_channels, reduction=4) ----------------------------------
    # seed_predictor: InstanceNorm -> BatchNorm -> ReLU -> Conv(C -> 1).
    s3 = bn_relu(inorm(t3), vec[_R_SBN_S], vec[_R_SBN_B])
    # Conv(C->1) and the broadcast back across channels fused into one matmul
    # against the block outer(sw, ones) matrix -> lane-dense weight field.
    wgt = mm(s3.reshape(N2, WC), sw_ref).reshape(TB, H, WC) + vec[_R_SB]
    wgt = jnp.tanh(jnp.maximum(wgt, 0.0))
    # F.normalize(w, p=1, dim=2): L1 normalize over the H axis.
    denom = jnp.maximum(jnp.sum(jnp.abs(wgt), axis=1, keepdims=True), 1e-12)
    if precise:
        wgt = wgt / denom
    else:
        wgt = wgt * pl.reciprocal(denom, approx=True)

    # x_w = t * w ; x_sum = sum over H  -> a single lane-dense row per sample.
    x_sum = jnp.sum(t3 * wgt, axis=1)                               # (TB, WC)

    # PointCA.conv: Conv(C->Ci) -> BatchNorm -> ReLU -> Conv(Ci->C) -> sigmoid
    # (block-diagonal weights, lane-padded to WCIP; conv1 bias folded into BN,
    #  padded lanes have scale=bias=0 and zero weight rows, so they stay 0).
    u = mm(x_sum, cw1_ref)                                          # (TB, WCIP)
    u = bn_relu(u, vec[_R_CBN_S, :WCIP], vec[_R_CBN_B, :WCIP])
    g = mm(u, cw2_ref) + vec[_R_CB2]                                # (TB, WC)
    gate = jax.nn.sigmoid(g)[:, None, :]
    t3 = t3 * gate

    # --- Conv1x1 -> InstanceNorm -> BatchNorm -> ReLU ------------------------
    y3 = mm(t3.reshape(N2, WC), w2_ref).reshape(TB, H, WC)
    y3 = bn_relu(inorm(y3), vec[_R_BN2_S], vec[_R_BN2_B])

    # Residual (out_channels == channels -> identity shortcut); lane-dense store.
    o_ref[...] = (y3 + x3).astype(o_ref.dtype)


def _bn_fold(g, b, rm, rv, eps=_BN_EPS):
    scale = g * jax.lax.rsqrt(rv + eps)
    return scale, b - rm * scale


def _block_diag(w_io, W):
    """w_io: (Cin, Cout) -> (W*Cin, W*Cout), W copies of w_io on the diagonal."""
    Cin, Cout = w_io.shape
    eye = jnp.eye(W, dtype=w_io.dtype)
    return (eye[:, None, :, None] * w_io[None, :, None, :]).reshape(
        W * Cin, W * Cout)


def _choose_batch_tile(B, per_sample_bytes, budget_bytes):
    divisors = [d for d in range(1, B + 1) if B % d == 0]
    fitting = [d for d in divisors if d * per_sample_bytes <= budget_bytes] or [1]
    # Prefer an even number of grid steps so a 2-TensorCore chip (v7x) can
    # shard the "parallel" batch axis across both cores (no B>=4 guard).
    even = [d for d in fitting if (B // d) % 2 == 0]
    return max(even) if even else max(fitting)


def pointcn_forward_lane_dense(x_lane, params, *, C, W, precise=True):
    """x_lane: (B, H, W*C) channels-last lane-dense activations -> same shape."""
    f32 = jnp.float32
    B, H, WC = x_lane.shape
    assert WC == W * C
    Ci = params["cw1"].shape[0]
    WCi = W * Ci
    WCIP = min(((WCi + 127) // 128) * 128, WC)   # lane-pad the inner MLP width

    # ---- fold / repack parameters (trace-time work, free per call) ---------
    def tile_w(v):                       # (C,)  -> (W*C,) at lane index w*C+c
        return jnp.tile(v.astype(f32), W)

    def tile_ci(v):                      # (Ci,) -> (W*C,) zero-padded past W*Ci
        return jnp.pad(jnp.tile(v.astype(f32), W), (0, WC - WCi))

    bn1_s, bn1_b = _bn_fold(params["bn1_g"], params["bn1_b"],
                            params["bn1_rm"], params["bn1_rv"])
    sbn_s, sbn_b = _bn_fold(params["sbn_g"], params["sbn_b"],
                            params["sbn_rm"], params["sbn_rv"])
    cbn_s, cbn_b = _bn_fold(params["cbn_g"], params["cbn_b"],
                            params["cbn_rm"], params["cbn_rv"])
    bn2_s, bn2_b = _bn_fold(params["bn2_g"], params["bn2_b"],
                            params["bn2_rm"], params["bn2_rv"])
    # Fold the PointCA conv1 bias into the folded BN: s*(u+cb1)+b = s*u+(b+s*cb1).
    cbn_b = cbn_b + cbn_s * params["cb1"]

    rows = [None] * _K_VEC
    rows[_R_BN1_S], rows[_R_BN1_B] = tile_w(bn1_s), tile_w(bn1_b)
    rows[_R_SBN_S], rows[_R_SBN_B] = tile_w(sbn_s), tile_w(sbn_b)
    rows[_R_SB] = jnp.broadcast_to(params["sb"].reshape(()).astype(f32), (WC,))
    rows[_R_CBN_S], rows[_R_CBN_B] = tile_ci(cbn_s), tile_ci(cbn_b)
    rows[_R_CB2] = tile_w(params["cb2"])
    rows[_R_BN2_S], rows[_R_BN2_B] = tile_w(bn2_s), tile_w(bn2_b)
    vec = jnp.stack([r.astype(f32) for r in rows])                  # (10, W*C)

    # Block-diagonal 1x1-conv weights (conv1/conv2 biases cancelled by the
    # InstanceNorm that follows them, so they are dropped).
    mm_dtype = f32 if precise else jnp.bfloat16
    w1_bd = _block_diag(params["w1"].T.astype(f32), W).astype(mm_dtype)
    w2_bd = _block_diag(params["w2"].T.astype(f32), W).astype(mm_dtype)
    sw_vec = params["sw"].reshape(C).astype(f32)
    sw_bd = _block_diag(sw_vec[:, None] * jnp.ones((1, C), f32), W).astype(mm_dtype)
    cw1_bd = jnp.pad(_block_diag(params["cw1"].T.astype(f32), W),
                     ((0, 0), (0, WCIP - WCi))).astype(mm_dtype)    # (WC, WCIP)
    cw2_bd = jnp.pad(_block_diag(params["cw2"].T.astype(f32), W),
                     ((0, WCIP - WCi), (0, 0))).astype(mm_dtype)    # (WCIP, WC)
    # "Sum over the W lane groups and broadcast back" matrix with the 1/(H*W)
    # InstanceNorm scaling folded in; kept f32 so statistics stay accurate.
    gsum = (jnp.ones((W, 1, W, 1), f32) *
            jnp.eye(C, dtype=f32)[None, :, None, :]).reshape(WC, WC) / (H * W)

    # ---- VMEM sizing & batch tiling -----------------------------------------
    weights = (vec, gsum, w1_bd, sw_bd, cw1_bd, cw2_bd, w2_bd)
    weight_bytes = sum(a.size * a.dtype.itemsize for a in weights)
    try:
        vmem_phys = pltpu.get_tpu_info().vmem_capacity_bytes
    except Exception:
        vmem_phys = 64 * 2**20
    # Above the v5e/v6e scoped defaults, safely below v7x's 64 MiB per-core VMEM.
    vmem_limit = int(min(48 * 2**20, (vmem_phys * 3) // 4))

    per_sample_block = H * WC * 4                 # lane-dense, no phantom pad
    per_sample_live = 14 * per_sample_block       # in/out dbl-buffers + live f32s
    block_budget = max(vmem_limit - 2 * weight_bytes - 4 * 2**20, per_sample_live)
    TB = _choose_batch_tile(B, per_sample_live, block_budget)
    grid = (B // TB,)

    kernel = functools.partial(pointcn_kernel, precise=precise)

    in_specs = [
        pl.BlockSpec((TB, H, WC), lambda b: (b, 0, 0)),    # x (lane-dense)
        pl.BlockSpec((_K_VEC, WC), lambda b: (0, 0)),      # stacked per-lane vectors
        pl.BlockSpec((WC, WC), lambda b: (0, 0)),          # group-sum/broadcast
        pl.BlockSpec((WC, WC), lambda b: (0, 0)),          # conv1 (block-diag)
        pl.BlockSpec((WC, WC), lambda b: (0, 0)),          # seed conv (block-diag)
        pl.BlockSpec((WC, WCIP), lambda b: (0, 0)),        # PointCA conv1
        pl.BlockSpec((WCIP, WC), lambda b: (0, 0)),        # PointCA conv2
        pl.BlockSpec((WC, WC), lambda b: (0, 0)),          # conv2 (block-diag)
    ]

    return pl.pallas_call(
        kernel,
        out_shape=jax.ShapeDtypeStruct((B, H, WC), jnp.float32),
        grid_spec=pltpu.PrefetchScalarGridSpec(
            num_scalar_prefetch=0,
            grid=grid,
            in_specs=in_specs,
            out_specs=pl.BlockSpec((TB, H, WC), lambda b: (b, 0, 0)),
        ),
        compiler_params=pltpu.CompilerParams(
            dimension_semantics=("parallel",),
            vmem_limit_bytes=vmem_limit,
        ),
    )(x_lane, vec, gsum, w1_bd, sw_bd, cw1_bd, cw2_bd, w2_bd)


def pointcn_forward(x_nchw, params, *, precise=True):
    """PointCN forward. x_nchw: (B, C, H, W) float32 -> (B, C, H, W) float32."""
    B, C, H, W = x_nchw.shape
    # NCHW -> lane-dense (B, H, W*C); channels-last callers can skip both
    # transposes by calling pointcn_forward_lane_dense directly.
    x_lane = jnp.transpose(x_nchw, (0, 2, 3, 1)).reshape(B, H, W * C)
    out = pointcn_forward_lane_dense(x_lane, params, C=C, W=W, precise=precise)
    return jnp.transpose(out.reshape(B, H, W, C), (0, 3, 1, 2))


def init_params(key, C):
    Ci = C // 4  # PointCN uses PointCA(out_channels, reduction=4)
    keys = iter(jax.random.split(key, 32))

    def nrm(shape, scale=0.1):
        return scale * jax.random.normal(next(keys), shape, dtype=jnp.float32)

    def bn(ch):
        return (1.0 + nrm((ch,)), nrm((ch,)), nrm((ch,)),
                1.0 + jnp.abs(nrm((ch,))))

    p = {}
    p["w1"], p["b1"] = nrm((C, C)), nrm((C,))   # b1 cancelled by InstanceNorm
    p["bn1_g"], p["bn1_b"], p["bn1_rm"], p["bn1_rv"] = bn(C)
    # PointCA seed predictor
    p["sbn_g"], p["sbn_b"], p["sbn_rm"], p["sbn_rv"] = bn(C)
    p["sw"], p["sb"] = nrm((1, C)), nrm((1,))
    # PointCA channel-attention MLP
    p["cw1"], p["cb1"] = nrm((Ci, C)), nrm((Ci,))
    p["cbn_g"], p["cbn_b"], p["cbn_rm"], p["cbn_rv"] = bn(Ci)
    p["cw2"], p["cb2"] = nrm((C, Ci)), nrm((C,))
    # tail conv
    p["w2"], p["b2"] = nrm((C, C)), nrm((C,))   # b2 cancelled by InstanceNorm
    p["bn2_g"], p["bn2_b"], p["bn2_rm"], p["bn2_rv"] = bn(C)
    return p


if __name__ == "__main__":
    B, C, H, W = 2, 32, 16, 8
    key = jax.random.PRNGKey(0)
    kx, kp = jax.random.split(key)
    x = jax.random.normal(kx, (B, C, H, W), dtype=jnp.float32)
    params = init_params(kp, C)

    out = jax.block_until_ready(pointcn_forward(x, params))
    assert out.shape == (B, C, H, W), out.shape
    assert bool(jnp.all(jnp.isfinite(out)))
    print("KERNEL_OK")
</pallas_src>

<mosaic_0001>
module attributes {stable_mosaic.version = 11 : i64} {
  func.func @pointcn_kernel(%arg0: i32, %arg1: memref<1x16x256xf32, #tpu.memory_space<vmem>>, %arg2: memref<10x256xf32, #tpu.memory_space<vmem>>, %arg3: memref<256x256xf32, #tpu.memory_space<vmem>>, %arg4: memref<256x256xf32, #tpu.memory_space<vmem>>, %arg5: memref<256x256xf32, #tpu.memory_space<vmem>>, %arg6: memref<256x128xf32, #tpu.memory_space<vmem>>, %arg7: memref<128x256xf32, #tpu.memory_space<vmem>>, %arg8: memref<256x256xf32, #tpu.memory_space<vmem>>, %arg9: memref<1x16x256xf32, #tpu.memory_space<vmem>>) attributes {dimension_semantics = [#tpu.dimension_semantics<parallel>], iteration_bounds = array<i64: 2>, scalar_prefetch = 0 : i64, scratch_operands = 0 : i64, tpu.core_type = #tpu.core_type<tc>, window_params = [{transform_indices = @transform_0, window_bounds = array<i64: 1, 16, 256>}, {pipeline_mode = #tpu.pipeline_mode<synchronous>, transform_indices = @transform_1, window_bounds = array<i64: 10, 256>}, {pipeline_mode = #tpu.pipeline_mode<synchronous>, transform_indices = @transform_2, window_bounds = array<i64: 256, 256>}, {pipeline_mode = #tpu.pipeline_mode<synchronous>, transform_indices = @transform_3, window_bounds = array<i64: 256, 256>}, {pipeline_mode = #tpu.pipeline_mode<synchronous>, transform_indices = @transform_4, window_bounds = array<i64: 256, 256>}, {pipeline_mode = #tpu.pipeline_mode<synchronous>, transform_indices = @transform_5, window_bounds = array<i64: 256, 128>}, {pipeline_mode = #tpu.pipeline_mode<synchronous>, transform_indices = @transform_6, window_bounds = array<i64: 128, 256>}, {pipeline_mode = #tpu.pipeline_mode<synchronous>, transform_indices = @transform_7, window_bounds = array<i64: 256, 256>}, {transform_indices = @transform_8, window_bounds = array<i64: 1, 16, 256>}]} {
    %c0 = arith.constant 0 : index
    %c0_0 = arith.constant 0 : index
    %c0_1 = arith.constant 0 : index
    %0 = vector.load %arg1[%c0, %c0_0, %c0_1] : memref<1x16x256xf32, #tpu.memory_space<vmem>>, vector<1x16x256xf32>
    %c0_2 = arith.constant 0 : index
    %c0_3 = arith.constant 0 : index
    %1 = vector.load %arg2[%c0_2, %c0_3] : memref<10x256xf32, #tpu.memory_space<vmem>>, vector<10x256xf32>
    %2 = vector.shape_cast %0 : vector<1x16x256xf32> to vector<16x256xf32>
    %c0_4 = arith.constant 0 : index
    %c0_5 = arith.constant 0 : index
    %3 = vector.load %arg4[%c0_4, %c0_5] : memref<256x256xf32, #tpu.memory_space<vmem>>, vector<256x256xf32>
    %cst = arith.constant dense<0.000000e+00> : vector<16x256xf32>
    %4 = tpu.matmul %2, %3, %cst {dimension_numbers = #tpu.dot_dimension_numbers<[1], [0], [0], [1], [0, 0, 1, 1], [], []>} : vector<16x256xf32>, vector<256x256xf32>, vector<16x256xf32> -> vector<16x256xf32>
    %5 = vector.shape_cast %4 : vector<16x256xf32> to vector<1x16x256xf32>
    %cst_6 = arith.constant dense<0.000000e+00> : vector<1x256xf32>
    %6 = vector.multi_reduction <add>, %5, %cst_6 [1] : vector<1x16x256xf32> to vector<1x256xf32>
    %c0_7 = arith.constant 0 : index
    %c0_8 = arith.constant 0 : index
    %7 = vector.load %arg3[%c0_7, %c0_8] : memref<256x256xf32, #tpu.memory_space<vmem>>, vector<256x256xf32>
    %cst_9 = arith.constant dense<0.000000e+00> : vector<1x256xf32>
    %8 = tpu.matmul %6, %7, %cst_9 {dimension_numbers = #tpu.dot_dimension_numbers<[1], [0], [0], [1], [0, 0, 1, 1], [], []>} : vector<1x256xf32>, vector<256x256xf32>, vector<1x256xf32> -> vector<1x256xf32>
    %9 = vector.shape_cast %8 : vector<1x256xf32> to vector<1x1x256xf32>
    %10 = vector.broadcast %9 : vector<1x1x256xf32> to vector<1x16x256xf32>
    %11 = arith.subf %5, %10 : vector<1x16x256xf32>
    %12 = arith.mulf %11, %11 : vector<1x16x256xf32>
    %cst_10 = arith.constant dense<0.000000e+00> : vector<1x256xf32>
    %13 = vector.multi_reduction <add>, %12, %cst_10 [1] : vector<1x16x256xf32> to vector<1x256xf32>
    %c0_11 = arith.constant 0 : index
    %c0_12 = arith.constant 0 : index
    %14 = vector.load %arg3[%c0_11, %c0_12] : memref<256x256xf32, #tpu.memory_space<vmem>>, vector<256x256xf32>
    %cst_13 = arith.constant dense<0.000000e+00> : vector<1x256xf32>
    %15 = tpu.matmul %13, %14, %cst_13 {dimension_numbers = #tpu.dot_dimension_numbers<[1], [0], [0], [1], [0, 0, 1, 1], [], []>} : vector<1x256xf32>, vector<256x256xf32>, vector<1x256xf32> -> vector<1x256xf32>
    %16 = vector.shape_cast %15 : vector<1x256xf32> to vector<1x1x256xf32>
    %cst_14 = arith.constant 1.000000e-03 : f32
    %17 = vector.broadcast %cst_14 : f32 to vector<1x1x256xf32>
    %18 = arith.addf %16, %17 : vector<1x1x256xf32>
    %19 = math.rsqrt %18 : vector<1x1x256xf32>
    %20 = vector.broadcast %19 : vector<1x1x256xf32> to vector<1x16x256xf32>
    %21 = arith.mulf %11, %20 : vector<1x16x256xf32>
    %22 = vector.extract_strided_slice %1 {offsets = [0, 0], sizes = [1, 256], strides = [1, 1]} : vector<10x256xf32> to vector<1x256xf32>
    %23 = vector.shape_cast %22 : vector<1x256xf32> to vector<256xf32>
    %24 = vector.extract_strided_slice %1 {offsets = [1, 0], sizes = [1, 256], strides = [1, 1]} : vector<10x256xf32> to vector<1x256xf32>
    %25 = vector.shape_cast %24 : vector<1x256xf32> to vector<256xf32>
    %26 = vector.shape_cast %23 : vector<256xf32> to vector<1x1x256xf32>
    %27 = vector.broadcast %26 : vector<1x1x256xf32> to vector<1x16x256xf32>
    %28 = arith.mulf %21, %27 : vector<1x16x256xf32>
    %29 = vector.shape_cast %25 : vector<256xf32> to vector<1x1x256xf32>
    %30 = vector.broadcast %29 : vector<1x1x256xf32> to vector<1x16x256xf32>
    %31 = arith.addf %28, %30 : vector<1x16x256xf32>
    %cst_15 = arith.constant 0.000000e+00 : f32
    %32 = vector.broadcast %cst_15 : f32 to vector<1x16x256xf32>
    %33 = arith.maximumf %31, %32 : vector<1x16x256xf32>
    %cst_16 = arith.constant dense<0.000000e+00> : vector<1x256xf32>
    %34 = vector.multi_reduction <add>, %33, %cst_16 [1] : vector<1x16x256xf32> to vector<1x256xf32>
    %c0_17 = arith.constant 0 : index
    %c0_18 = arith.constant 0 : index
    %35 = vector.load %arg3[%c0_17, %c0_18] : memref<256x256xf32, #tpu.memory_space<vmem>>, vector<256x256xf32>
    %cst_19 = arith.constant dense<0.000000e+00> : vector<1x256xf32>
    %36 = tpu.matmul %34, %35, %cst_19 {dimension_numbers = #tpu.dot_dimension_numbers<[1], [0], [0], [1], [0, 0, 1, 1], [], []>} : vector<1x256xf32>, vector<256x256xf32>, vector<1x256xf32> -> vector<1x256xf32>
    %37 = vector.shape_cast %36 : vector<1x256xf32> to vector<1x1x256xf32>
    %38 = vector.broadcast %37 : vector<1x1x256xf32> to vector<1x16x256xf32>
    %39 = arith.subf %33, %38 : vector<1x16x256xf32>
    %40 = arith.mulf %39, %39 : vector<1x16x256xf32>
    %cst_20 = arith.constant dense<0.000000e+00> : vector<1x256xf32>
    %41 = vector.multi_reduction <add>, %40, %cst_20 [1] : vector<1x16x256xf32> to vector<1x256xf32>
    %c0_21 = arith.constant 0 : index
    %c0_22 = arith.constant 0 : index
    %42 = vector.load %arg3[%c0_21, %c0_22] : memref<256x256xf32, #tpu.memory_space<vmem>>, vector<256x256xf32>
    %cst_23 = arith.constant dense<0.000000e+00> : vector<1x256xf32>
    %43 = tpu.matmul %41, %42, %cst_23 {dimension_numbers = #tpu.dot_dimension_numbers<[1], [0], [0], [1], [0, 0, 1, 1], [], []>} : vector<1x256xf32>, vector<256x256xf32>, vector<1x256xf32> -> vector<1x256xf32>
    %44 = vector.shape_cast %43 : vector<1x256xf32> to vector<1x1x256xf32>
    %cst_24 = arith.constant 1.000000e-03 : f32
    %45 = vector.broadcast %cst_24 : f32 to vector<1x1x256xf32>
    %46 = arith.addf %44, %45 : vector<1x1x256xf32>
    %47 = math.rsqrt %46 : vector<1x1x256xf32>
    %48 = vector.broadcast %47 : vector<1x1x256xf32> to vector<1x16x256xf32>
    %49 = arith.mulf %39, %48 : vector<1x16x256xf32>
    %50 = vector.extract_strided_slice %1 {offsets = [2, 0], sizes = [1, 256], strides = [1, 1]} : vector<10x256xf32> to vector<1x256xf32>
    %51 = vector.shape_cast %50 : vector<1x256xf32> to vector<256xf32>
    %52 = vector.extract_strided_slice %1 {offsets = [3, 0], sizes = [1, 256], strides = [1, 1]} : vector<10x256xf32> to vector<1x256xf32>
    %53 = vector.shape_cast %52 : vector<1x256xf32> to vector<256xf32>
    %54 = vector.shape_cast %51 : vector<256xf32> to vector<1x1x256xf32>
    %55 = vector.broadcast %54 : vector<1x1x256xf32> to vector<1x16x256xf32>
    %56 = arith.mulf %49, %55 : vector<1x16x256xf32>
    %57 = vector.shape_cast %53 : vector<256xf32> to vector<1x1x256xf32>
    %58 = vector.broadcast %57 : vector<1x1x256xf32> to vector<1x16x256xf32>
    %59 = arith.addf %56, %58 : vector<1x16x256xf32>
    %cst_25 = arith.constant 0.000000e+00 : f32
    %60 = vector.broadcast %cst_25 : f32 to vector<1x16x256xf32>
    %61 = arith.maximumf %59, %60 : vector<1x16x256xf32>
    %62 = vector.shape_cast %61 : vector<1x16x256xf32> to vector<16x256xf32>
    %c0_26 = arith.constant 0 : index
    %c0_27 = arith.constant 0 : index
    %63 = vector.load %arg5[%c0_26, %c0_27] : memref<256x256xf32, #tpu.memory_space<vmem>>, vector<256x256xf32>
    %cst_28 = arith.constant dense<0.000000e+00> : vector<16x256xf32>
    %64 = tpu.matmul %62, %63, %cst_28 {dimension_numbers = #tpu.dot_dimension_numbers<[1], [0], [0], [1], [0, 0, 1, 1], [], []>} : vector<16x256xf32>, vector<256x256xf32>, vector<16x256xf32> -> vector<16x256xf32>
    %65 = vector.shape_cast %64 : vector<16x256xf32> to vector<1x16x256xf32>
    %66 = vector.extract_strided_slice %1 {offsets = [4, 0], sizes = [1, 256], strides = [1, 1]} : vector<10x256xf32> to vector<1x256xf32>
    %67 = vector.shape_cast %66 : vector<1x256xf32> to vector<256xf32>
    %68 = vector.shape_cast %67 : vector<256xf32> to vector<1x1x256xf32>
    %69 = vector.broadcast %68 : vector<1x1x256xf32> to vector<1x16x256xf32>
    %70 = arith.addf %65, %69 : vector<1x16x256xf32>
    %cst_29 = arith.constant 0.000000e+00 : f32
    %71 = vector.broadcast %cst_29 : f32 to vector<1x16x256xf32>
    %72 = arith.maximumf %70, %71 : vector<1x16x256xf32>
    %73 = math.tanh %72 : vector<1x16x256xf32>
    %74 = math.absf %73 : vector<1x16x256xf32>
    %cst_30 = arith.constant dense<0.000000e+00> : vector<1x256xf32>
    %75 = vector.multi_reduction <add>, %74, %cst_30 [1] : vector<1x16x256xf32> to vector<1x256xf32>
    %76 = vector.shape_cast %75 : vector<1x256xf32> to vector<1x1x256xf32>
    %cst_31 = arith.constant 9.99999996E-13 : f32
    %77 = vector.broadcast %cst_31 : f32 to vector<1x1x256xf32>
    %78 = arith.maximumf %76, %77 : vector<1x1x256xf32>
    %79 = vector.broadcast %78 : vector<1x1x256xf32> to vector<1x16x256xf32>
    %80 = arith.divf %73, %79 : vector<1x16x256xf32>
    %81 = arith.mulf %33, %80 : vector<1x16x256xf32>
    %cst_32 = arith.constant dense<0.000000e+00> : vector<1x256xf32>
    %82 = vector.multi_reduction <add>, %81, %cst_32 [1] : vector<1x16x256xf32> to vector<1x256xf32>
    %c0_33 = arith.constant 0 : index
    %c0_34 = arith.constant 0 : index
    %83 = vector.load %arg6[%c0_33, %c0_34] : memref<256x128xf32, #tpu.memory_space<vmem>>, vector<256x128xf32>
    %cst_35 = arith.constant dense<0.000000e+00> : vector<1x128xf32>
    %84 = tpu.matmul %82, %83, %cst_35 {dimension_numbers = #tpu.dot_dimension_numbers<[1], [0], [0], [1], [0, 0, 1, 1], [], []>} : vector<1x256xf32>, vector<256x128xf32>, vector<1x128xf32> -> vector<1x128xf32>
    %85 = vector.extract_strided_slice %1 {offsets = [5, 0], sizes = [1, 128], strides = [1, 1]} : vector<10x256xf32> to vector<1x128xf32>
    %86 = vector.shape_cast %85 : vector<1x128xf32> to vector<128xf32>
    %87 = vector.extract_strided_slice %1 {offsets = [6, 0], sizes = [1, 128], strides = [1, 1]} : vector<10x256xf32> to vector<1x128xf32>
    %88 = vector.shape_cast %87 : vector<1x128xf32> to vector<128xf32>
    %89 = vector.shape_cast %86 : vector<128xf32> to vector<1x128xf32>
    %90 = arith.mulf %84, %89 : vector<1x128xf32>
    %91 = vector.shape_cast %88 : vector<128xf32> to vector<1x128xf32>
    %92 = arith.addf %90, %91 : vector<1x128xf32>
    %cst_36 = arith.constant 0.000000e+00 : f32
    %93 = vector.broadcast %cst_36 : f32 to vector<1x128xf32>
    %94 = arith.maximumf %92, %93 : vector<1x128xf32>
    %c0_37 = arith.constant 0 : index
    %c0_38 = arith.constant 0 : index
    %95 = vector.load %arg7[%c0_37, %c0_38] : memref<128x256xf32, #tpu.memory_space<vmem>>, vector<128x256xf32>
    %cst_39 = arith.constant dense<0.000000e+00> : vector<1x256xf32>
    %96 = tpu.matmul %94, %95, %cst_39 {dimension_numbers = #tpu.dot_dimension_numbers<[1], [0], [0], [1], [0, 0, 1, 1], [], []>} : vector<1x128xf32>, vector<128x256xf32>, vector<1x256xf32> -> vector<1x256xf32>
    %97 = vector.extract_strided_slice %1 {offsets = [7, 0], sizes = [1, 256], strides = [1, 1]} : vector<10x256xf32> to vector<1x256xf32>
    %98 = vector.shape_cast %97 : vector<1x256xf32> to vector<256xf32>
    %99 = vector.shape_cast %98 : vector<256xf32> to vector<1x256xf32>
    %100 = arith.addf %96, %99 : vector<1x256xf32>
    %101 = arith.negf %100 : vector<1x256xf32>
    %102 = math.exp %101 : vector<1x256xf32>
    %cst_40 = arith.constant 1.000000e+00 : f32
    %103 = vector.broadcast %cst_40 : f32 to vector<1x256xf32>
    %104 = arith.addf %103, %102 : vector<1x256xf32>
    %105 = arith.divf %103, %104 : vector<1x256xf32>
    %106 = vector.shape_cast %105 : vector<1x256xf32> to vector<1x1x256xf32>
    %107 = vector.broadcast %106 : vector<1x1x256xf32> to vector<1x16x256xf32>
    %108 = arith.mulf %33, %107 : vector<1x16x256xf32>
    %109 = vector.shape_cast %108 : vector<1x16x256xf32> to vector<16x256xf32>
    %c0_41 = arith.constant 0 : index
    %c0_42 = arith.constant 0 : index
    %110 = vector.load %arg8[%c0_41, %c0_42] : memref<256x256xf32, #tpu.memory_space<vmem>>, vector<256x256xf32>
    %cst_43 = arith.constant dense<0.000000e+00> : vector<16x256xf32>
    %111 = tpu.matmul %109, %110, %cst_43 {dimension_numbers = #tpu.dot_dimension_numbers<[1], [0], [0], [1], [0, 0, 1, 1], [], []>} : vector<16x256xf32>, vector<256x256xf32>, vector<16x256xf32> -> vector<16x256xf32>
    %112 = vector.shape_cast %111 : vector<16x256xf32> to vector<1x16x256xf32>
    %cst_44 = arith.constant dense<0.000000e+00> : vector<1x256xf32>
    %113 = vector.multi_reduction <add>, %112, %cst_44 [1] : vector<1x16x256xf32> to vector<1x256xf32>
    %c0_45 = arith.constant 0 : index
    %c0_46 = arith.constant 0 : index
    %114 = vector.load %arg3[%c0_45, %c0_46] : memref<256x256xf32, #tpu.memory_space<vmem>>, vector<256x256xf32>
    %cst_47 = arith.constant dense<0.000000e+00> : vector<1x256xf32>
    %115 = tpu.matmul %113, %114, %cst_47 {dimension_numbers = #tpu.dot_dimension_numbers<[1], [0], [0], [1], [0, 0, 1, 1], [], []>} : vector<1x256xf32>, vector<256x256xf32>, vector<1x256xf32> -> vector<1x256xf32>
    %116 = vector.shape_cast %115 : vector<1x256xf32> to vector<1x1x256xf32>
    %117 = vector.broadcast %116 : vector<1x1x256xf32> to vector<1x16x256xf32>
    %118 = arith.subf %112, %117 : vector<1x16x256xf32>
    %119 = arith.mulf %118, %118 : vector<1x16x256xf32>
    %cst_48 = arith.constant dense<0.000000e+00> : vector<1x256xf32>
    %120 = vector.multi_reduction <add>, %119, %cst_48 [1] : vector<1x16x256xf32> to vector<1x256xf32>
    %c0_49 = arith.constant 0 : index
    %c0_50 = arith.constant 0 : index
    %121 = vector.load %arg3[%c0_49, %c0_50] : memref<256x256xf32, #tpu.memory_space<vmem>>, vector<256x256xf32>
    %cst_51 = arith.constant dense<0.000000e+00> : vector<1x256xf32>
    %122 = tpu.matmul %120, %121, %cst_51 {dimension_numbers = #tpu.dot_dimension_numbers<[1], [0], [0], [1], [0, 0, 1, 1], [], []>} : vector<1x256xf32>, vector<256x256xf32>, vector<1x256xf32> -> vector<1x256xf32>
    %123 = vector.shape_cast %122 : vector<1x256xf32> to vector<1x1x256xf32>
    %cst_52 = arith.constant 1.000000e-03 : f32
    %124 = vector.broadcast %cst_52 : f32 to vector<1x1x256xf32>
    %125 = arith.addf %123, %124 : vector<1x1x256xf32>
    %126 = math.rsqrt %125 : vector<1x1x256xf32>
    %127 = vector.broadcast %126 : vector<1x1x256xf32> to vector<1x16x256xf32>
    %128 = arith.mulf %118, %127 : vector<1x16x256xf32>
    %129 = vector.extract_strided_slice %1 {offsets = [8, 0], sizes = [1, 256], strides = [1, 1]} : vector<10x256xf32> to vector<1x256xf32>
    %130 = vector.shape_cast %129 : vector<1x256xf32> to vector<256xf32>
    %131 = vector.extract_strided_slice %1 {offsets = [9, 0], sizes = [1, 256], strides = [1, 1]} : vector<10x256xf32> to vector<1x256xf32>
    %132 = vector.shape_cast %131 : vector<1x256xf32> to vector<256xf32>
    %133 = vector.shape_cast %130 : vector<256xf32> to vector<1x1x256xf32>
    %134 = vector.broadcast %133 : vector<1x1x256xf32> to vector<1x16x256xf32>
    %135 = arith.mulf %128, %134 : vector<1x16x256xf32>
    %136 = vector.shape_cast %132 : vector<256xf32> to vector<1x1x256xf32>
    %137 = vector.broadcast %136 : vector<1x1x256xf32> to vector<1x16x256xf32>
    %138 = arith.addf %135, %137 : vector<1x16x256xf32>
    %cst_53 = arith.constant 0.000000e+00 : f32
    %139 = vector.broadcast %cst_53 : f32 to vector<1x16x256xf32>
    %140 = arith.maximumf %138, %139 : vector<1x16x256xf32>
    %141 = arith.addf %140, %0 : vector<1x16x256xf32>
    %c0_54 = arith.constant 0 : index
    %c0_55 = arith.constant 0 : index
    %c0_56 = arith.constant 0 : index
    %142 = vector.load %arg9[%c0_54, %c0_55, %c0_56] : memref<1x16x256xf32, #tpu.memory_space<vmem>>, vector<1x16x256xf32>
    tpu.vector_store %arg9[%c0_54, %c0_55, %c0_56], %141 {strides = array<i32>} : memref<1x16x256xf32, #tpu.memory_space<vmem>>, vector<1x16x256xf32>,
    return
  }
  func.func @transform_0(%arg0: i32) -> (i32, i32, i32) {
    %c0_i32 = arith.constant 0 : i32
    %c0_i32_0 = arith.constant 0 : i32
    %c0_i32_1 = arith.constant 0 : i32
    return %arg0, %c0_i32, %c0_i32_0 : i32, i32, i32
  }
  func.func @transform_1(%arg0: i32) -> (i32, i32) {
    %c0_i32 = arith.constant 0 : i32
    %c0_i32_0 = arith.constant 0 : i32
    %c0_i32_1 = arith.constant 0 : i32
    return %c0_i32, %c0_i32_0 : i32, i32
  }
  func.func @transform_2(%arg0: i32) -> (i32, i32) {
    %c0_i32 = arith.constant 0 : i32
    %c0_i32_0 = arith.constant 0 : i32
    %c0_i32_1 = arith.constant 0 : i32
    return %c0_i32, %c0_i32_0 : i32, i32
  }
  func.func @transform_3(%arg0: i32) -> (i32, i32) {
    %c0_i32 = arith.constant 0 : i32
    %c0_i32_0 = arith.constant 0 : i32
    %c0_i32_1 = arith.constant 0 : i32
    return %c0_i32, %c0_i32_0 : i32, i32
  }
  func.func @transform_4(%arg0: i32) -> (i32, i32) {
    %c0_i32 = arith.constant 0 : i32
    %c0_i32_0 = arith.constant 0 : i32
    %c0_i32_1 = arith.constant 0 : i32
    return %c0_i32, %c0_i32_0 : i32, i32
  }
  func.func @transform_5(%arg0: i32) -> (i32, i32) {
    %c0_i32 = arith.constant 0 : i32
    %c0_i32_0 = arith.constant 0 : i32
    %c0_i32_1 = arith.constant 0 : i32
    return %c0_i32, %c0_i32_0 : i32, i32
  }
  func.func @transform_6(%arg0: i32) -> (i32, i32) {
    %c0_i32 = arith.constant 0 : i32
    %c0_i32_0 = arith.constant 0 : i32
    %c0_i32_1 = arith.constant 0 : i32
    return %c0_i32, %c0_i32_0 : i32, i32
  }
  func.func @transform_7(%arg0: i32) -> (i32, i32) {
    %c0_i32 = arith.constant 0 : i32
    %c0_i32_0 = arith.constant 0 : i32
    %c0_i32_1 = arith.constant 0 : i32
    return %c0_i32, %c0_i32_0 : i32, i32
  }
  func.func @transform_8(%arg0: i32) -> (i32, i32, i32) {
    %c0_i32 = arith.constant 0 : i32
    %c0_i32_0 = arith.constant 0 : i32
    %c0_i32_1 = arith.constant 0 : i32
    return %arg0, %c0_i32, %c0_i32_0 : i32, i32, i32
  }
}

</mosaic_0001>

<llo_original>
// kernel: tpu_custom_call.1
$region0: #{tpu_custom_call.1}
  #allocation0 [shape = 'u32[]', space=smem, size = 0x4, offset = 0x4, fixed_abs, tag = 'smem constant byte address 0x4 - core index']
  #allocation1 [shape = 'u32[144,128]{1,0:T(1,128)}', space=vmem, size = 0x12000, scoped, tag = 'internal scratch']
  %s0 = inlined_call_operand.hbm [shape: f32[2,16,256], index: 0, kind: input, shape index: {}]
  %s1 = inlined_call_operand.hbm [shape: f32[10,256], index: 1, kind: input, shape index: {}]
  %s2 = inlined_call_operand.hbm [shape: f32[256,256], index: 2, kind: input, shape index: {}]
  %s3 = inlined_call_operand.hbm [shape: f32[256,256], index: 3, kind: input, shape index: {}]
  %s4 = inlined_call_operand.hbm [shape: f32[256,256], index: 4, kind: input, shape index: {}]
  %s5 = inlined_call_operand.hbm [shape: f32[256,128], index: 5, kind: input, shape index: {}]
  %s6 = inlined_call_operand.hbm [shape: f32[128,256], index: 6, kind: input, shape index: {}]
  %s7 = inlined_call_operand.hbm [shape: f32[256,256], index: 7, kind: input, shape index: {}]
  %s8 = inlined_call_operand.hbm [shape: f32[2,16,256], index: 8, kind: output, shape index: {}]
  %s9 = sld [smem:[#allocation0]]
  $region97: #{tpu_custom_call.1} parent=0
    _
  %s11 = ssub.s32 1, %s9
  %s12 = scalar_select 0, %s11, %s9
  $region1: #{tpu_custom_call.1} parent=0
    #allocation2 [shape = 'u8[32768]{0}', space=vmem, size = 0x8000, scoped, tag = 'input window, operand 0']
    #allocation3 [shape = 's32[2]{0}', space=sflag, size = 0x8, scoped, tag = 'scoped memory for tpu_custom_call.1']
    #allocation4 [shape = 's32[2]{0}', space=sflag, size = 0x8, scoped, tag = 'scoped memory for tpu_custom_call.1']
    #allocation5 [shape = 'u8[16384]{0}', space=vmem, size = 0x4000, scoped, tag = 'input window, operand 1, single buffered']
    #allocation6 [shape = 's32[1]{0}', space=sflag, size = 0x4, scoped, tag = 'scoped memory for tpu_custom_call.1']
    #allocation7 [shape = 'u8[262144]{0}', space=vmem, size = 0x40000, scoped, tag = 'input window, operand 2, single buffered']
    #allocation8 [shape = 'u8[262144]{0}', space=vmem, size = 0x40000, scoped, tag = 'input window, operand 3, single buffered']
    #allocation9 [shape = 's32[1]{0}', space=sflag, size = 0x4, scoped, tag = 'scoped memory for tpu_custom_call.1']
    #allocation10 [shape = 'u8[262144]{0}', space=vmem, size = 0x40000, scoped, tag = 'input window, operand 4, single buffered']
    #allocation11 [shape = 'u8[131072]{0}', space=vmem, size = 0x20000, scoped, tag = 'input window, operand 5, single buffered']
    #allocation12 [shape = 's32[1]{0}', space=sflag, size = 0x4, scoped, tag = 'scoped memory for tpu_custom_call.1']
    #allocation13 [shape = 'u8[131072]{0}', space=vmem, size = 0x20000, scoped, tag = 'input window, operand 6, single buffered']
    #allocation14 [shape = 'u8[262144]{0}', space=vmem, size = 0x40000, scoped, tag = 'input window, operand 7, single buffered']
    #allocation15 [shape = 's32[1]{0}', space=sflag, size = 0x4, scoped, tag = 'scoped memory for tpu_custom_call.1']
    #allocation16 [shape = 'u8[32768]{0}', space=vmem, size = 0x8000, scoped, tag = 'output window, operand 0']
    %13 = vsyncpa [#allocation3], 0
    %s14 = scalar_lea.sflag [#allocation3], 1
    %15 = vsyncpa %s14, 0
    %16 = vsyncpa [#allocation6], 0
    %17 = vsyncpa [#allocation9], 0
    %18 = vsyncpa [#allocation12], 0
    %19 = vsyncpa [#allocation15], 0
    %20 = vsyncpa [#allocation4], 0
    %s21 = scalar_lea.sflag [#allocation4], 1
    %22 = vsyncpa %s21, 0
    loop: start=0, step=1, limit=4
    $region2: #{tpu_custom_call.1} parent=1 // loop_pre_header
      _
    $region3: #{tpu_custom_call.1} parent=1 // loop_header
      %s24 = sphi 0, %s28
      %p25 = scmp.ge.s32.totalorder %s24, 4
      %s34 = sphi 0, %s36
      %s37 = sphi 0, %s34
      %s38 = sphi 0, %s37
      %s54 = sphi 0, %s38
      %s58 = sphi 0, %s58
      %s60 = sphi 0, %s58
      %s61 = sphi 0, %s60
      %s75 = sphi 0, %s61
      %s79 = sphi 0, %s79
      %s81 = sphi 0, %s79
      %s82 = sphi 0, %s81
      %s96 = sphi 0, %s82
      %s100 = sphi 0, %s100
      %s102 = sphi 0, %s100
      %s103 = sphi 0, %s102
      %s117 = sphi 0, %s103
      %s121 = sphi 0, %s121
      %s123 = sphi 0, %s121
      %s124 = sphi 0, %s123
      %s138 = sphi 0, %s124
      %s142 = sphi 0, %s142
      %s144 = sphi 0, %s142
      %s145 = sphi 0, %s144
      %s159 = sphi 0, %s145
      %s163 = sphi 0, %s163
      %s165 = sphi 0, %s163
      %s166 = sphi 0, %s165
      %s180 = sphi 0, %s166
      %s184 = sphi 0, %s184
      %s186 = sphi 0, %s184
      %s187 = sphi 0, %s186
      %s201 = sphi 0, %s187
      %s207 = sphi 0, %s209
      %s210 = sphi 0, %s207
      %s211 = sphi 0, %s210
      %s227 = sphi 0, %s211
    $region4: #{tpu_custom_call.1} parent=1 // loop_header_branch
      %27 = sbr.rel (%p25) target = $region8
    $region5: #{tpu_custom_call.1} parent=1 // loop_body
      %s29 = ssub.s32 %s24, 1
      %s30 = ssub.s32 %s24, 2
      %s31 = sadd.s32 %s24, 1
      %s32 = ssub.s32 %s24, %s31
      %p33 = scmp.eq.s32.totalorder %s32, 0
      %s35 = sadd.s32 %s34, 1
      %s36 = scalar_select %p33, %s34, %s35
      %p39 = pneg %p33
      %p40 = scmp.eq.s32.totalorder %s24, 1
      %p41 = por %p39, %p40
      %p42 = scmp.ne.s32.totalorder %s34, %s37
      %p43 = scmp.eq.s32.totalorder %s24, 0
      %p44 = por %p42, %p43
      %p45 = scmp.ne.s32.totalorder %s34, %s37
      %p46 = scmp.eq.s32.totalorder %s29, 1
      %p47 = por %p45, %p46
      %p48 = scmp.ne.s32.totalorder %s37, %s38
      %p49 = scmp.eq.s32.totalorder %s29, 0
      %p50 = por %p48, %p49
      %p51 = scmp.ne.s32.totalorder %s37, %s38
      %p52 = scmp.eq.s32.totalorder %s30, 1
      %p53 = por %p51, %p52
      %p55 = scmp.ne.s32.totalorder %s38, %s54
      %p56 = scmp.eq.s32.totalorder %s30, 0
      %p57 = por %p55, %p56
      %s59 = sadd.s32 %s58, 1
      %p62 = scmp.eq.s32.totalorder %s24, 1
      %p63 = scmp.ne.s32.totalorder %s58, %s60
      %p64 = scmp.eq.s32.totalorder %s24, 0
      %p65 = por %p63, %p64
      %p66 = scmp.ne.s32.totalorder %s58, %s60
      %p67 = scmp.eq.s32.totalorder %s29, 1
      %p68 = por %p66, %p67
      %p69 = scmp.ne.s32.totalorder %s60, %s61
      %p70 = scmp.eq.s32.totalorder %s29, 0
      %p71 = por %p69, %p70
      %p72 = scmp.ne.s32.totalorder %s60, %s61
      %p73 = scmp.eq.s32.totalorder %s30, 1
      %p74 = por %p72, %p73
      %p76 = scmp.ne.s32.totalorder %s61, %s75
      %p77 = scmp.eq.s32.totalorder %s30, 0
      %p78 = por %p76, %p77
      %s80 = sadd.s32 %s79, 1
      %p83 = scmp.eq.s32.totalorder %s24, 1
      %p84 = scmp.ne.s32.totalorder %s79, %s81
      %p85 = scmp.eq.s32.totalorder %s24, 0
      %p86 = por %p84, %p85
      %p87 = scmp.ne.s32.totalorder %s79, %s81
      %p88 = scmp.eq.s32.totalorder %s29, 1
      %p89 = por %p87, %p88
      %p90 = scmp.ne.s32.totalorder %s81, %s82
      %p91 = scmp.eq.s32.totalorder %s29, 0
      %p92 = por %p90, %p91
      %p93 = scmp.ne.s32.totalorder %s81, %s82
      %p94 = scmp.eq.s32.totalorder %s30, 1
      %p95 = por %p93, %p94
      %p97 = scmp.ne.s32.totalorder %s82, %s96
      %p98 = scmp.eq.s32.totalorder %s30, 0
      %p99 = por %p97, %p98
      %s101 = sadd.s32 %s100, 1
      %p104 = scmp.eq.s32.totalorder %s24, 1
      %p105 = scmp.ne.s32.totalorder %s100, %s102
      %p106 = scmp.eq.s32.totalorder %s24, 0
      %p107 = por %p105, %p106
      %p108 = scmp.ne.s32.totalorder %s100, %s102
      %p109 = scmp.eq.s32.totalorder %s29, 1
      %p110 = por %p108, %p109
      %p111 = scmp.ne.s32.totalorder %s102, %s103
      %p112 = scmp.eq.s32.totalorder %s29, 0
      %p113 = por %p111, %p112
      %p114 = scmp.ne.s32.totalorder %s102, %s103
      %p115 = scmp.eq.s32.totalorder %s30, 1
      %p116 = por %p114, %p115
      %p118 = scmp.ne.s32.totalorder %s103, %s117
      %p119 = scmp.eq.s32.totalorder %s30, 0
      %p120 = por %p118, %p119
      %s122 = sadd.s32 %s121, 1
      %p125 = scmp.eq.s32.totalorder %s24, 1
      %p126 = scmp.ne.s32.totalorder %s121, %s123
      %p127 = scmp.eq.s32.totalorder %s24, 0
      %p128 = por %p126, %p127
      %p129 = scmp.ne.s32.totalorder %s121, %s123
      %p130 = scmp.eq.s32.totalorder %s29, 1
      %p131 = por %p129, %p130
      %p132 = scmp.ne.s32.totalorder %s123, %s124
      %p133 = scmp.eq.s32.totalorder %s29, 0
      %p134 = por %p132, %p133
      %p135 = scmp.ne.s32.totalorder %s123, %s124
      %p136 = scmp.eq.s32.totalorder %s30, 1
      %p137 = por %p135, %p136
      %p139 = scmp.ne.s32.totalorder %s124, %s138
      %p140 = scmp.eq.s32.totalorder %s30, 0
      %p141 = por %p139, %p140
      %s143 = sadd.s32 %s142, 1
      %p146 = scmp.eq.s32.totalorder %s24, 1
      %p147 = scmp.ne.s32.totalorder %s142, %s144
      %p148 = scmp.eq.s32.totalorder %s24, 0
      %p149 = por %p147, %p148
      %p150 = scmp.ne.s32.totalorder %s142, %s144
      %p151 = scmp.eq.s32.totalorder %s29, 1
      %p152 = por %p150, %p151
      %p153 = scmp.ne.s32.totalorder %s144, %s145
      %p154 = scmp.eq.s32.totalorder %s29, 0
      %p155 = por %p153, %p154
      %p156 = scmp.ne.s32.totalorder %s144, %s145
      %p157 = scmp.eq.s32.totalorder %s30, 1
      %p158 = por %p156, %p157
      %p160 = scmp.ne.s32.totalorder %s145, %s159
      %p161 = scmp.eq.s32.totalorder %s30, 0
      %p162 = por %p160, %p161
      %s164 = sadd.s32 %s163, 1
      %p167 = scmp.eq.s32.totalorder %s24, 1
      %p168 = scmp.ne.s32.totalorder %s163, %s165
      %p169 = scmp.eq.s32.totalorder %s24, 0
      %p170 = por %p168, %p169
      %p171 = scmp.ne.s32.totalorder %s163, %s165
      %p172 = scmp.eq.s32.totalorder %s29, 1
      %p173 = por %p171, %p172
      %p174 = scmp.ne.s32.totalorder %s165, %s166
      %p175 = scmp.eq.s32.totalorder %s29, 0
      %p176 = por %p174, %p175
      %p177 = scmp.ne.s32.totalorder %s165, %s166
      %p178 = scmp.eq.s32.totalorder %s30, 1
      %p179 = por %p177, %p178
      %p181 = scmp.ne.s32.totalorder %s166, %s180
      %p182 = scmp.eq.s32.totalorder %s30, 0
      %p183 = por %p181, %p182
      %s185 = sadd.s32 %s184, 1
      %p188 = scmp.eq.s32.totalorder %s24, 1
      %p189 = scmp.ne.s32.totalorder %s184, %s186
      %p190 = scmp.eq.s32.totalorder %s24, 0
      %p191 = por %p189, %p190
      %p192 = scmp.ne.s32.totalorder %s184, %s186
      %p193 = scmp.eq.s32.totalorder %s29, 1
      %p194 = por %p192, %p193
      %p195 = scmp.ne.s32.totalorder %s186, %s187
      %p196 = scmp.eq.s32.totalorder %s29, 0
      %p197 = por %p195, %p196
      %p198 = scmp.ne.s32.totalorder %s186, %s187
      %p199 = scmp.eq.s32.totalorder %s30, 1
      %p200 = por %p198, %p199
      %p202 = scmp.ne.s32.totalorder %s187, %s201
      %p203 = scmp.eq.s32.totalorder %s30, 0
      %p204 = por %p202, %p203
      %s205 = ssub.s32 %s24, %s31
      %p206 = scmp.eq.s32.totalorder %s205, 0
      %s208 = sadd.s32 %s207, 1
      %s209 = scalar_select %p206, %s207, %s208
      %p212 = pneg %p206
      %p213 = scmp.eq.s32.totalorder %s24, 1
      %p214 = por %p212, %p213
      %p215 = scmp.ne.s32.totalorder %s207, %s210
      %p216 = scmp.eq.s32.totalorder %s24, 0
      %p217 = por %p215, %p216
      %p218 = scmp.ne.s32.totalorder %s207, %s210
      %p219 = scmp.eq.s32.totalorder %s29, 1
      %p220 = por %p218, %p219
      %p221 = scmp.ne.s32.totalorder %s210, %s211
      %p222 = scmp.eq.s32.totalorder %s29, 0
      %p223 = por %p221, %p222
      %p224 = scmp.ne.s32.totalorder %s210, %s211
      %p225 = scmp.eq.s32.totalorder %s30, 1
      %p226 = por %p224, %p225
      %p228 = scmp.ne.s32.totalorder %s211, %s227
      %p229 = scmp.eq.s32.totalorder %s30, 0
      %p230 = por %p228, %p229
      %p231 = scmp.le.s32.totalorder 1, %s24
      %p232 = scmp.lt.s32.totalorder %s24, 3
      %p233 = pnand %p231, %p232
      %p234 = pneg %p233
      // Predicated region
      $region9: #{tpu_custom_call.1} parent=5 // pred_check
        _
      $region10: #{tpu_custom_call.1} parent=5 // pred_check_branch
        %236 = sbr.rel (%p233) target = $region12
      $region11: #{tpu_custom_call.1} parent=5 // pred_region
        %s237 = ssub.s32 %s24, 1
        // Predicated region
        $region13: #{tpu_custom_call.1} parent=11 // pred_check
          %p238 = pneg %p71
        $region14: #{tpu_custom_call.1} parent=11 // pred_check_branch
          %240 = sbr.rel (%p238) target = $region16
        $region15: #{tpu_custom_call.1} parent=11 // pred_region
          %s242 = ssub.s32 512, 512
          %243 = vsyncadd [#allocation6], %s242
          %s244 = sshll.u32 [#allocation5], 4
          %s245 = int_to_ptr.vmem [resolvable:$true] %s244
          %250 = dma.hbm_to_vmem [thread:$0]  %s1, 512, %s245, [#allocation6], 256, 256, 16
        $region16: #{tpu_custom_call.1} parent=11 // pred_fallthru
          _
        // Predicated region
        $region17: #{tpu_custom_call.1} parent=11 // pred_check
          %p251 = pneg %p92
        $region18: #{tpu_custom_call.1} parent=11 // pred_check_branch
          %253 = sbr.rel (%p251) target = $region20
        $region19: #{tpu_custom_call.1} parent=11 // pred_region
          %s255 = ssub.s32 8192, 8192
          %256 = vsyncadd [#allocation6], %s255
          %s257 = sshll.u32 [#allocation7], 4
          %s258 = int_to_ptr.vmem [resolvable:$true] %s257
          %263 = dma.hbm_to_vmem [thread:$0]  %s2, 8192, %s258, [#allocation6], 256, 256, 16
        $region20: #{tpu_custom_call.1} parent=11 // pred_fallthru
          _
        // Predicated region
        $region21: #{tpu_custom_call.1} parent=11 // pred_check
          %p264 = pneg %p113
        $region22: #{tpu_custom_call.1} parent=11 // pred_check_branch
          %266 = sbr.rel (%p264) target = $region24
        $region23: #{tpu_custom_call.1} parent=11 // pred_region
          %s268 = ssub.s32 8192, 8192
          %269 = vsyncadd [#allocation9], %s268
          %s270 = sshll.u32 [#allocation8], 4
          %s271 = int_to_ptr.vmem [resolvable:$true] %s270
          %276 = dma.hbm_to_vmem [thread:$0]  %s3, 8192, %s271, [#allocation9], 256, 256, 16
        $region24: #{tpu_custom_call.1} parent=11 // pred_fallthru
          _
        // Predicated region
        $region25: #{tpu_custom_call.1} parent=11 // pred_check
          %p277 = pneg %p134
        $region26: #{tpu_custom_call.1} parent=11 // pred_check_branch
          %279 = sbr.rel (%p277) target = $region28
        $region27: #{tpu_custom_call.1} parent=11 // pred_region
          %s281 = ssub.s32 8192, 8192
          %282 = vsyncadd [#allocation9], %s281
          %s283 = sshll.u32 [#allocation10], 4
          %s284 = int_to_ptr.vmem [resolvable:$true] %s283
          %289 = dma.hbm_to_vmem [thread:$0]  %s4, 8192, %s284, [#allocation9], 256, 256, 16
        $region28: #{tpu_custom_call.1} parent=11 // pred_fallthru
          _
        // Predicated region
        $region29: #{tpu_custom_call.1} parent=11 // pred_check
          %p290 = pneg %p155
        $region30: #{tpu_custom_call.1} parent=11 // pred_check_branch
          %292 = sbr.rel (%p290) target = $region32
        $region31: #{tpu_custom_call.1} parent=11 // pred_region
          %s294 = ssub.s32 4096, 4096
          %295 = vsyncadd [#allocation12], %s294
          %s296 = sshll.u32 [#allocation11], 4
          %s297 = int_to_ptr.vmem [resolvable:$true] %s296
          %302 = dma.hbm_to_vmem [thread:$0]  %s5, 4096, %s297, [#allocation12], 128, 128, 8
        $region32: #{tpu_custom_call.1} parent=11 // pred_fallthru
          _
        // Predicated region
        $region33: #{tpu_custom_call.1} parent=11 // pred_check
          %p303 = pneg %p176
        $region34: #{tpu_custom_call.1} parent=11 // pred_check_branch
          %305 = sbr.rel (%p303) target = $region36
        $region35: #{tpu_custom_call.1} parent=11 // pred_region
          %s307 = ssub.s32 4096, 4096
          %308 = vsyncadd [#allocation12], %s307
          %s309 = sshll.u32 [#allocation13], 4
          %s310 = int_to_ptr.vmem [resolvable:$true] %s309
          %315 = dma.hbm_to_vmem [thread:$0]  %s6, 4096, %s310, [#allocation12], 256, 256, 16
        $region36: #{tpu_custom_call.1} parent=11 // pred_fallthru
          _
        // Predicated region
        $region37: #{tpu_custom_call.1} parent=11 // pred_check
          %p316 = pneg %p197
        $region38: #{tpu_custom_call.1} parent=11 // pred_check_branch
          %318 = sbr.rel (%p316) target = $region40
        $region39: #{tpu_custom_call.1} parent=11 // pred_region
          %s320 = ssub.s32 8192, 8192
          %321 = vsyncadd [#allocation15], %s320
          %s322 = sshll.u32 [#allocation14], 4
          %s323 = int_to_ptr.vmem [resolvable:$true] %s322
          %328 = dma.hbm_to_vmem [thread:$0]  %s7, 8192, %s323, [#allocation15], 256, 256, 16
        $region40: #{tpu_custom_call.1} parent=11 // pred_fallthru
          _
      $region12: #{tpu_custom_call.1} parent=5 // pred_fallthru
        _
      %p329 = scmp.lt.s32.totalorder %s24, 2
      // Predicated region
      $region41: #{tpu_custom_call.1} parent=5 // pred_check
        %p330 = pneg %p329
      $region42: #{tpu_custom_call.1} parent=5 // pred_check_branch
        %332 = sbr.rel (%p330) target = $region44
      $region43: #{tpu_custom_call.1} parent=5 // pred_region
        // Predicated region
        $region45: #{tpu_custom_call.1} parent=43 // pred_check
          %p333 = pneg %p44
        $region46: #{tpu_custom_call.1} parent=43 // pred_check_branch
          %335 = sbr.rel (%p333) target = $region48
        $region47: #{tpu_custom_call.1} parent=43 // pred_region
          %s336 = sand.u32 %s34, 1
          %s337 = scalar_lea.sflag [#allocation3], %s336
          %s338 = sand.u32 %s34, 1
          %s339 = smul.addr %s338, 32
          %s340 = scalar_lea.vmem [#allocation2], %s339
          %s342 = ssub.s32 512, 512
          %343 = vsyncadd %s337, %s342
          %s344 = smul.addr %s24, 4
          %s345 = smul.addr %s344, 128
          %s346 = scalar_lea.hbm %s0, %s345
          %s347 = sshll.u32 %s340, 4
          %s348 = int_to_ptr.vmem [resolvable:$true] %s347
          %353 = dma.hbm_to_vmem [thread:$0]  %s346, 512, %s348, %s337, 256, 256, 16
        $region48: #{tpu_custom_call.1} parent=43 // pred_fallthru
          _
      $region44: #{tpu_custom_call.1} parent=5 // pred_fallthru
        _
      %p354 = scmp.le.s32.totalorder 1, %s24
      %p355 = scmp.lt.s32.totalorder %s24, 3
      %p356 = pnand %p354, %p355
      %p357 = pneg %p356
      // Predicated region
      $region49: #{tpu_custom_call.1} parent=5 // pred_check
        _
      $region50: #{tpu_custom_call.1} parent=5 // pred_check_branch
        %359 = sbr.rel (%p356) target = $region52
      $region51: #{tpu_custom_call.1} parent=5 // pred_region
        %s360 = ssub.s32 %s24, 1
        %s361 = sand.u32 %s37, 1
        %s362 = scalar_lea.sflag [#allocation3], %s361
        %s363 = sand.u32 %s37, 1
        %s364 = smul.addr %s363, 32
        %s365 = scalar_lea.vmem [#allocation2], %s364
        // Predicated region
        $region53: #{tpu_custom_call.1} parent=51 // pred_check
          %p366 = pneg %p50
        $region54: #{tpu_custom_call.1} parent=51 // pred_check_branch
          %368 = sbr.rel (%p366) target = $region56
        $region55: #{tpu_custom_call.1} parent=51 // pred_region
          %369 = dma.done %s362, 512
        $region56: #{tpu_custom_call.1} parent=51 // pred_fallthru
          _
        // Predicated region
        $region57: #{tpu_custom_call.1} parent=51 // pred_check
          %p370 = pneg %p71
        $region58: #{tpu_custom_call.1} parent=51 // pred_check_branch
          %372 = sbr.rel (%p370) target = $region60
        $region59: #{tpu_custom_call.1} parent=51 // pred_region
          %373 = dma.done [#allocation6], 512
        $region60: #{tpu_custom_call.1} parent=51 // pred_fallthru
          _
        // Predicated region
        $region61: #{tpu_custom_call.1} parent=51 // pred_check
          %p374 = pneg %p92
        $region62: #{tpu_custom_call.1} parent=51 // pred_check_branch
          %376 = sbr.rel (%p374) target = $region64
        $region63: #{tpu_custom_call.1} parent=51 // pred_region
          %377 = dma.done [#allocation6], 8192
        $region64: #{tpu_custom_call.1} parent=51 // pred_fallthru
          _
        // Predicated region
        $region65: #{tpu_custom_call.1} parent=51 // pred_check
          %p378 = pneg %p113
        $region66: #{tpu_custom_call.1} parent=51 // pred_check_branch
          %380 = sbr.rel (%p378) target = $region68
        $region67: #{tpu_custom_call.1} parent=51 // pred_region
          %381 = dma.done [#allocation9], 8192
        $region68: #{tpu_custom_call.1} parent=51 // pred_fallthru
          _
        // Predicated region
        $region69: #{tpu_custom_call.1} parent=51 // pred_check
          %p382 = pneg %p134
        $region70: #{tpu_custom_call.1} parent=51 // pred_check_branch
          %384 = sbr.rel (%p382) target = $region72
        $region71: #{tpu_custom_call.1} parent=51 // pred_region
          %385 = dma.done [#allocation9], 8192
        $region72: #{tpu_custom_call.1} parent=51 // pred_fallthru
          _
        // Predicated region
        $region73: #{tpu_custom_call.1} parent=51 // pred_check
          %p386 = pneg %p155
        $region74: #{tpu_custom_call.1} parent=51 // pred_check_branch
          %388 = sbr.rel (%p386) target = $region76
        $region75: #{tpu_custom_call.1} parent=51 // pred_region
          %389 = dma.done [#allocation12], 4096
        $region76: #{tpu_custom_call.1} parent=51 // pred_fallthru
          _
        // Predicated region
        $region77: #{tpu_custom_call.1} parent=51 // pred_check
          %p390 = pneg %p176
        $region78: #{tpu_custom_call.1} parent=51 // pred_check_branch
          %392 = sbr.rel (%p390) target = $region80
        $region79: #{tpu_custom_call.1} parent=51 // pred_region
          %393 = dma.done [#allocation12], 4096
        $region80: #{tpu_custom_call.1} parent=51 // pred_fallthru
          _
        // Predicated region
        $region81: #{tpu_custom_call.1} parent=51 // pred_check
          %p394 = pneg %p197
        $region82: #{tpu_custom_call.1} parent=51 // pred_check_branch
          %396 = sbr.rel (%p394) target = $region84
        $region83: #{tpu_custom_call.1} parent=51 // pred_region
          %397 = dma.done [#allocation15], 8192
        $region84: #{tpu_custom_call.1} parent=51 // pred_fallthru
          _
        %s398 = sand.u32 %s37, 1
        %s399 = scalar_lea.sflag [#allocation3], %s398
        %s400 = sand.u32 %s37, 1
        %s401 = smul.addr %s400, 32
        %s402 = scalar_lea.vmem [#allocation2], %s401
        %p403 = pneg %p50
        %p404 = pneg %p47
        %p405 = pneg %p71
        %p406 = pneg %p68
        %p407 = pneg %p92
        %p408 = pneg %p89
        %p409 = pneg %p113
        %p410 = pneg %p110
        %p411 = pneg %p134
        %p412 = pneg %p131
        %p413 = pneg %p155
        %p414 = pneg %p152
        %p415 = pneg %p176
        %p416 = pneg %p173
        %p417 = pneg %p197
        %p418 = pneg %p194
        %p419 = pneg %p223
        %p420 = pneg %p220
        %s421 = sand.u32 %s210, 1
        %s422 = scalar_lea.sflag [#allocation4], %s421
        %s423 = sand.u32 %s210, 1
        %s424 = smul.addr %s423, 32
        %s425 = scalar_lea.vmem [#allocation16], %s424
        %v426 = vld [vmem:[%s365] sm:$0xff]
        %v427 = vld [vmem:[%s365 + $0x8] sm:$0xff]
        %v428 = vld [vmem:[%s365 + $0x10] sm:$0xff]
        %v429 = vld [vmem:[%s365 + $0x18] sm:$0xff]
        %v430 = vld [vmem:[#allocation5] sm:$0xff]
        %v431 = vld [vmem:[#allocation5 + $0x8] sm:$0xff]
        %v432 = vld [vmem:[#allocation5 + $0x10] sm:$0x3]
        %v433 = vld [vmem:[#allocation5 + $0x18] sm:$0x3]
        %v434 = vld [vmem:[#allocation8] sm:$0xff]
        %v435 = vld [vmem:[#allocation8 + $0x8] sm:$0xff]
        %v436 = vld [vmem:[#allocation8 + $0x10] sm:$0xff]
        %v437 = vld [vmem:[#allocation8 + $0x18] sm:$0xff]
        %v438 = vld [vmem:[#allocation8 + $0x20] sm:$0xff]
        %v439 = vld [vmem:[#allocation8 + $0x28] sm:$0xff]
        %v440 = vld [vmem:[#allocation8 + $0x30] sm:$0xff]
        %v441 = vld [vmem:[#allocation8 + $0x38] sm:$0xff]
        %v442 = vld [vmem:[#allocation8 + $0x40] sm:$0xff]
        %v443 = vld [vmem:[#allocation8 + $0x48] sm:$0xff]
        %v444 = vld [vmem:[#allocation8 + $0x50] sm:$0xff]
        %v445 = vld [vmem:[#allocation8 + $0x58] sm:$0xff]
        %v446 = vld [vmem:[#allocation8 + $0x60] sm:$0xff]
        %v447 = vld [vmem:[#allocation8 + $0x68] sm:$0xff]
        %v448 = vld [vmem:[#allocation8 + $0x70] sm:$0xff]
        %v449 = vld [vmem:[#allocation8 + $0x78] sm:$0xff]
        %v450 = vld [vmem:[#allocation8 + $0x80] sm:$0xff]
        %v451 = vld [vmem:[#allocation8 + $0x88] sm:$0xff]
        %v452 = vld [vmem:[#allocation8 + $0x90] sm:$0xff]
        %v453 = vld [vmem:[#allocation8 + $0x98] sm:$0xff]
        %v454 = vld [vmem:[#allocation8 + $0xa0] sm:$0xff]
        %v455 = vld [vmem:[#allocation8 + $0xa8] sm:$0xff]
        %v456 = vld [vmem:[#allocation8 + $0xb0] sm:$0xff]
        %v457 = vld [vmem:[#allocation8 + $0xb8] sm:$0xff]
        %v458 = vld [vmem:[#allocation8 + $0xc0] sm:$0xff]
        %v459 = vld [vmem:[#allocation8 + $0xc8] sm:$0xff]
        %v460 = vld [vmem:[#allocation8 + $0xd0] sm:$0xff]
        %v461 = vld [vmem:[#allocation8 + $0xd8] sm:$0xff]
        %v462 = vld [vmem:[#allocation8 + $0xe0] sm:$0xff]
        %v463 = vld [vmem:[#allocation8 + $0xe8] sm:$0xff]
        %v464 = vld [vmem:[#allocation8 + $0xf0] sm:$0xff]
        %v465 = vld [vmem:[#allocation8 + $0xf8] sm:$0xff]
        %v466 = vld [vmem:[#allocation8 + $0x100] sm:$0xff]
        %v467 = vld [vmem:[#allocation8 + $0x108] sm:$0xff]
        %v468 = vld [vmem:[#allocation8 + $0x110] sm:$0xff]
        %v469 = vld [vmem:[#allocation8 + $0x118] sm:$0xff]
        %v470 = vld [vmem:[#allocation8 + $0x120] sm:$0xff]
        %v471 = vld [vmem:[#allocation8 + $0x128] sm:$0xff]
        %v472 = vld [vmem:[#allocation8 + $0x130] sm:$0xff]
        %v473 = vld [vmem:[#allocation8 + $0x138] sm:$0xff]
        %v474 = vld [vmem:[#allocation8 + $0x140] sm:$0xff]
        %v475 = vld [vmem:[#allocation8 + $0x148] sm:$0xff]
        %v476 = vld [vmem:[#allocation8 + $0x150] sm:$0xff]
        %v477 = vld [vmem:[#allocation8 + $0x158] sm:$0xff]
        %v478 = vld [vmem:[#allocation8 + $0x160] sm:$0xff]
        %v479 = vld [vmem:[#allocation8 + $0x168] sm:$0xff]
        %v480 = vld [vmem:[#allocation8 + $0x170] sm:$0xff]
        %v481 = vld [vmem:[#allocation8 + $0x178] sm:$0xff]
        %v482 = vld [vmem:[#allocation8 + $0x180] sm:$0xff]
        %v483 = vld [vmem:[#allocation8 + $0x188] sm:$0xff]
        %v484 = vld [vmem:[#allocation8 + $0x190] sm:$0xff]
        %v485 = vld [vmem:[#allocation8 + $0x198] sm:$0xff]
        %v486 = vld [vmem:[#allocation8 + $0x1a0] sm:$0xff]
        %v487 = vld [vmem:[#allocation8 + $0x1a8] sm:$0xff]
        %v488 = vld [vmem:[#allocation8 + $0x1b0] sm:$0xff]
        %v489 = vld [vmem:[#allocation8 + $0x1b8] sm:$0xff]
        %v490 = vld [vmem:[#allocation8 + $0x1c0] sm:$0xff]
        %v491 = vld [vmem:[#allocation8 + $0x1c8] sm:$0xff]
        %v492 = vld [vmem:[#allocation8 + $0x1d0] sm:$0xff]
        %v493 = vld [vmem:[#allocation8 + $0x1d8] sm:$0xff]
        %v494 = vld [vmem:[#allocation8 + $0x1e0] sm:$0xff]
        %v495 = vld [vmem:[#allocation8 + $0x1e8] sm:$0xff]
        %v496 = vld [vmem:[#allocation8 + $0x1f0] sm:$0xff]
        %v497 = vld [vmem:[#allocation8 + $0x1f8] sm:$0xff]
        %498 = vmatprep.subr.mxu0 %v435
        %499 = vmatpush1.msra.mxu0 %v434
        %500 = vmatprep.subr.mxu0 %v437
        %501 = vmatpush1.msra.mxu0 %v436
        %502 = vmatprep.subr.mxu0 %v439
        %503 = vmatpush1.msra.mxu0 %v438
        %504 = vmatprep.subr.mxu0 %v441
        %505 = vmatpush1.msra.mxu0 %v440
        %506 = vmatprep.subr.mxu0 %v443
        %507 = vmatpush1.msra.mxu0 %v442
        %508 = vmatprep.subr.mxu0 %v445
        %509 = vmatpush1.msra.mxu0 %v444
        %510 = vmatprep.subr.mxu0 %v447
        %511 = vmatpush1.msra.mxu0 %v446
        %512 = vmatprep.subr.mxu0 %v449
        %513 = vmatpush1.msra.mxu0 %v448
        %514 = vmatprep.subr.mxu0 %v451
        %515 = vmatpush1.msra.mxu0 %v450
        %516 = vmatprep.subr.mxu0 %v453
        %517 = vmatpush1.msra.mxu0 %v452
        %518 = vmatprep.subr.mxu0 %v455
        %519 = vmatpush1.msra.mxu0 %v454
        %520 = vmatprep.subr.mxu0 %v457
        %521 = vmatpush1.msra.mxu0 %v456
        %522 = vmatprep.subr.mxu0 %v459
        %523 = vmatpush1.msra.mxu0 %v458
        %524 = vmatprep.subr.mxu0 %v461
        %525 = vmatpush1.msra.mxu0 %v460
        %526 = vmatprep.subr.mxu0 %v463
        %527 = vmatpush1.msra.mxu0 %v462
        %528 = vmatprep.subr.mxu0 %v465
        %529 = vmatpush1.msra.mxu0 %v464
        %530 = vmatprep.subr.mxu0 %v467
        %531 = vmatpush1.msra.mxu0 %v466
        %532 = vmatprep.subr.mxu0 %v469
        %533 = vmatpush1.msra.mxu0 %v468
        %534 = vmatprep.subr.mxu0 %v471
        %535 = vmatpush1.msra.mxu0 %v470
        %536 = vmatprep.subr.mxu0 %v473
        %537 = vmatpush1.msra.mxu0 %v472
        %538 = vmatprep.subr.mxu0 %v475
        %539 = vmatpush1.msra.mxu0 %v474
        %540 = vmatprep.subr.mxu0 %v477
        %541 = vmatpush1.msra.mxu0 %v476
        %542 = vmatprep.subr.mxu0 %v479
        %543 = vmatpush1.msra.mxu0 %v478
        %544 = vmatprep.subr.mxu0 %v481
        %545 = vmatpush1.msra.mxu0 %v480
        %546 = vmatprep.subr.mxu0 %v483
        %547 = vmatpush1.msra.mxu0 %v482
        %548 = vmatprep.subr.mxu0 %v485
        %549 = vmatpush1.msra.mxu0 %v484
        %550 = vmatprep.subr.mxu0 %v487
        %551 = vmatpush1.msra.mxu0 %v486
        %552 = vmatprep.subr.mxu0 %v489
        %553 = vmatpush1.msra.mxu0 %v488
        %554 = vmatprep.subr.mxu0 %v491
        %555 = vmatpush1.msra.mxu0 %v490
        %556 = vmatprep.subr.mxu0 %v493
        %557 = vmatpush1.msra.mxu0 %v492
        %558 = vmatprep.subr.mxu0 %v495
        %559 = vmatpush1.msra.mxu0 %v494
        %560 = vmatprep.subr.mxu0 %v497
        %561 = vmatpush1.msra.mxu0 %v496
        %562 = vmatprep.mubr.f32.mxu0 %v427
        %563 = vmatmul.mubr.f32.gmra.mrb[0].mxu0 %v426
        %v564 = vpop.f32.mrb[0].mxu0
        %v565 = vadd.f32 0.0, %v564
        %v566 = vpop.f32.mrb[0].mxu0
        %v567 = vadd.f32 0.0, %v566
        %568 = vmatprep.mubr.f32.mxu0 %v429
        %569 = vmatmul.mubr.f32.gmra.mrb[0].mxu0 %v428
        %v570 = vpop.f32.mrb[0].mxu0
        %v571 = vadd.f32 0.0, %v570
        %v572 = vpop.f32.mrb[0].mxu0
        %v573 = vadd.f32 0.0, %v572
        %574 = vdwg.mxu0
        %v575 = vadd.f32 %v565, %v571
        %v576 = vrot.slane %v575, 4
        %v577 = vadd.f32 %v575, %v576
        %v578 = vrot.slane %v577, 2
        %v579 = vadd.f32 %v577, %v578
        %v580 = vrot.slane %v579, 1
        %v581 = vadd.f32 %v579, %v580
        %v582 = vadd.f32 %v567, %v573
        %v583 = vrot.slane %v582, 4
        %v584 = vadd.f32 %v582, %v583
        %v585 = vrot.slane %v584, 2
        %v586 = vadd.f32 %v584, %v585
        %v587 = vrot.slane %v586, 1
        %v588 = vadd.f32 %v586, %v587
        %v589 = vld [vmem:[#allocation7] sm:$0xff]
        %v590 = vld [vmem:[#allocation7 + $0x8] sm:$0xff]
        %v591 = vld [vmem:[#allocation7 + $0x10] sm:$0xff]
        %v592 = vld [vmem:[#allocation7 + $0x18] sm:$0xff]
        %v593 = vld [vmem:[#allocation7 + $0x20] sm:$0xff]
        %v594 = vld [vmem:[#allocation7 + $0x28] sm:$0xff]
        %v595 = vld [vmem:[#allocation7 + $0x30] sm:$0xff]
        %v596 = vld [vmem:[#allocation7 + $0x38] sm:$0xff]
        %v597 = vld [vmem:[#allocation7 + $0x40] sm:$0xff]
        %v598 = vld [vmem:[#allocation7 + $0x48] sm:$0xff]
        %v599 = vld [vmem:[#allocation7 + $0x50] sm:$0xff]
        %v600 = vld [vmem:[#allocation7 + $0x58] sm:$0xff]
        %v601 = vld [vmem:[#allocation7 + $0x60] sm:$0xff]
        %v602 = vld [vmem:[#allocation7 + $0x68] sm:$0xff]
        %v603 = vld [vmem:[#allocation7 + $0x70] sm:$0xff]
        %v604 = vld [vmem:[#allocation7 + $0x78] sm:$0xff]
        %v605 = vld [vmem:[#allocation7 + $0x80] sm:$0xff]
        %v606 = vld [vmem:[#allocation7 + $0x88] sm:$0xff]
        %v607 = vld [vmem:[#allocation7 + $0x90] sm:$0xff]
        %v608 = vld [vmem:[#allocation7 + $0x98] sm:$0xff]
        %v609 = vld [vmem:[#allocation7 + $0xa0] sm:$0xff]
        %v610 = vld [vmem:[#allocation7 + $0xa8] sm:$0xff]
        %v611 = vld [vmem:[#allocation7 + $0xb0] sm:$0xff]
        %v612 = vld [vmem:[#allocation7 + $0xb8] sm:$0xff]
        %v613 = vld [vmem:[#allocation7 + $0xc0] sm:$0xff]
        %v614 = vld [vmem:[#allocation7 + $0xc8] sm:$0xff]
        %v615 = vld [vmem:[#allocation7 + $0xd0] sm:$0xff]
        %v616 = vld [vmem:[#allocation7 + $0xd8] sm:$0xff]
        %v617 = vld [vmem:[#allocation7 + $0xe0] sm:$0xff]
        %v618 = vld [vmem:[#allocation7 + $0xe8] sm:$0xff]
        %v619 = vld [vmem:[#allocation7 + $0xf0] sm:$0xff]
        %v620 = vld [vmem:[#allocation7 + $0xf8] sm:$0xff]
        %v621 = vld [vmem:[#allocation7 + $0x100] sm:$0xff]
        %v622 = vld [vmem:[#allocation7 + $0x108] sm:$0xff]
        %v623 = vld [vmem:[#allocation7 + $0x110] sm:$0xff]
        %v624 = vld [vmem:[#allocation7 + $0x118] sm:$0xff]
        %v625 = vld [vmem:[#allocation7 + $0x120] sm:$0xff]
        %v626 = vld [vmem:[#allocation7 + $0x128] sm:$0xff]
        %v627 = vld [vmem:[#allocation7 + $0x130] sm:$0xff]
        %v628 = vld [vmem:[#allocation7 + $0x138] sm:$0xff]
        %v629 = vld [vmem:[#allocation7 + $0x140] sm:$0xff]
        %v630 = vld [vmem:[#allocation7 + $0x148] sm:$0xff]
        %v631 = vld [vmem:[#allocation7 + $0x150] sm:$0xff]
        %v632 = vld [vmem:[#allocation7 + $0x158] sm:$0xff]
        %v633 = vld [vmem:[#allocation7 + $0x160] sm:$0xff]
        %v634 = vld [vmem:[#allocation7 + $0x168] sm:$0xff]
        %v635 = vld [vmem:[#allocation7 + $0x170] sm:$0xff]
        %v636 = vld [vmem:[#allocation7 + $0x178] sm:$0xff]
        %v637 = vld [vmem:[#allocation7 + $0x180] sm:$0xff]
        %v638 = vld [vmem:[#allocation7 + $0x188] sm:$0xff]
        %v639 = vld [vmem:[#allocation7 + $0x190] sm:$0xff]
        %v640 = vld [vmem:[#allocation7 + $0x198] sm:$0xff]
        %v641 = vld [vmem:[#allocation7 + $0x1a0] sm:$0xff]
        %v642 = vld [vmem:[#allocation7 + $0x1a8] sm:$0xff]
        %v643 = vld [vmem:[#allocation7 + $0x1b0] sm:$0xff]
        %v644 = vld [vmem:[#allocation7 + $0x1b8] sm:$0xff]
        %v645 = vld [vmem:[#allocation7 + $0x1c0] sm:$0xff]
        %v646 = vld [vmem:[#allocation7 + $0x1c8] sm:$0xff]
        %v647 = vld [vmem:[#allocation7 + $0x1d0] sm:$0xff]
        %v648 = vld [vmem:[#allocation7 + $0x1d8] sm:$0xff]
        %v649 = vld [vmem:[#allocation7 + $0x1e0] sm:$0xff]
        %v650 = vld [vmem:[#allocation7 + $0x1e8] sm:$0xff]
        %v651 = vld [vmem:[#allocation7 + $0x1f0] sm:$0xff]
        %v652 = vld [vmem:[#allocation7 + $0x1f8] sm:$0xff]
        %653 = vmatprep.subr.mxu0 %v590
        %654 = vmatpush1.msra.mxu0 %v589
        %655 = vmatprep.subr.mxu0 %v592
        %656 = vmatpush1.msra.mxu0 %v591
        %657 = vmatprep.subr.mxu0 %v594
        %658 = vmatpush1.msra.mxu0 %v593
        %659 = vmatprep.subr.mxu0 %v596
        %660 = vmatpush1.msra.mxu0 %v595
        %661 = vmatprep.subr.mxu0 %v598
        %662 = vmatpush1.msra.mxu0 %v597
        %663 = vmatprep.subr.mxu0 %v600
        %664 = vmatpush1.msra.mxu0 %v599
        %665 = vmatprep.subr.mxu0 %v602
        %666 = vmatpush1.msra.mxu0 %v601
        %667 = vmatprep.subr.mxu0 %v604
        %668 = vmatpush1.msra.mxu0 %v603
        %669 = vmatprep.subr.mxu0 %v606
        %670 = vmatpush1.msra.mxu0 %v605
        %671 = vmatprep.subr.mxu0 %v608
        %672 = vmatpush1.msra.mxu0 %v607
        %673 = vmatprep.subr.mxu0 %v610
        %674 = vmatpush1.msra.mxu0 %v609
        %675 = vmatprep.subr.mxu0 %v612
        %676 = vmatpush1.msra.mxu0 %v611
        %677 = vmatprep.subr.mxu0 %v614
        %678 = vmatpush1.msra.mxu0 %v613
        %679 = vmatprep.subr.mxu0 %v616
        %680 = vmatpush1.msra.mxu0 %v615
        %681 = vmatprep.subr.mxu0 %v618
        %682 = vmatpush1.msra.mxu0 %v617
        %683 = vmatprep.subr.mxu0 %v620
        %684 = vmatpush1.msra.mxu0 %v619
        %685 = vmatprep.subr.mxu0 %v622
        %686 = vmatpush1.msra.mxu0 %v621
        %687 = vmatprep.subr.mxu0 %v624
        %688 = vmatpush1.msra.mxu0 %v623
        %689 = vmatprep.subr.mxu0 %v626
        %690 = vmatpush1.msra.mxu0 %v625
        %691 = vmatprep.subr.mxu0 %v628
        %692 = vmatpush1.msra.mxu0 %v627
        %693 = vmatprep.subr.mxu0 %v630
        %694 = vmatpush1.msra.mxu0 %v629
        %695 = vmatprep.subr.mxu0 %v632
        %696 = vmatpush1.msra.mxu0 %v631
        %697 = vmatprep.subr.mxu0 %v634
        %698 = vmatpush1.msra.mxu0 %v633
        %699 = vmatprep.subr.mxu0 %v636
        %700 = vmatpush1.msra.mxu0 %v635
        %701 = vmatprep.subr.mxu0 %v638
        %702 = vmatpush1.msra.mxu0 %v637
        %703 = vmatprep.subr.mxu0 %v640
        %704 = vmatpush1.msra.mxu0 %v639
        %705 = vmatprep.subr.mxu0 %v642
        %706 = vmatpush1.msra.mxu0 %v641
        %707 = vmatprep.subr.mxu0 %v644
        %708 = vmatpush1.msra.mxu0 %v643
        %709 = vmatprep.subr.mxu0 %v646
        %710 = vmatpush1.msra.mxu0 %v645
        %711 = vmatprep.subr.mxu0 %v648
        %712 = vmatpush1.msra.mxu0 %v647
        %713 = vmatprep.subr.mxu0 %v650
        %714 = vmatpush1.msra.mxu0 %v649
        %715 = vmatprep.subr.mxu0 %v652
        %716 = vmatpush1.msra.mxu0 %v651
        %717 = vmatprep.mubr.f32.mxu0 %v588
        %718 = vmatmul.mubr.f32.gmra.mrb[0].mxu0 %v581
        %v719 = vpop.f32.mrb[0].mxu0
        %v720 = vadd.f32 0.0, %v719
        %v721 = vpop.f32.mrb[0].mxu0
        %v722 = vadd.f32 0.0, %v721
        %723 = vdwg.mxu0
        %v724 = vlaneseq
        %v725 = vshrl.u32 %v724, 7
        %v726 = vsub.s32 0, %v725
        %v727 = vrot.slane %v720, %v726
        %v728 = vlaneseq
        %v729 = vshrl.u32 %v728, 7
        %v730 = vsub.s32 0, %v729
        %v731 = vrot.slane %v722, %v730
        %v732 = vsub.f32 %v565, %v727
        %v733 = vsub.f32 %v567, %v731
        %v734 = vsub.f32 %v571, %v727
        %v735 = vsub.f32 %v573, %v731
        %v736 = vmul.f32 %v732, %v732
        %v737 = vmul.f32 %v733, %v733
        %v738 = vmul.f32 %v734, %v734
        %v739 = vmul.f32 %v735, %v735
        %v740 = vadd.f32 %v736, %v738
        %v741 = vrot.slane %v740, 4
        %v742 = vadd.f32 %v740, %v741
        %v743 = vrot.slane %v742, 2
        %v744 = vadd.f32 %v742, %v743
        %v745 = vrot.slane %v744, 1
        %v746 = vadd.f32 %v744, %v745
        %v747 = vadd.f32 %v737, %v739
        %v748 = vrot.slane %v747, 4
        %v749 = vadd.f32 %v747, %v748
        %v750 = vrot.slane %v749, 2
        %v751 = vadd.f32 %v749, %v750
        %v752 = vrot.slane %v751, 1
        %v753 = vadd.f32 %v751, %v752
        %754 = vmatprep.subr.mxu0 %v590
        %755 = vmatpush1.msra.mxu0 %v589
        %756 = vmatprep.subr.mxu0 %v592
        %757 = vmatpush1.msra.mxu0 %v591
        %758 = vmatprep.subr.mxu0 %v594
        %759 = vmatpush1.msra.mxu0 %v593
        %760 = vmatprep.subr.mxu0 %v596
        %761 = vmatpush1.msra.mxu0 %v595
        %762 = vmatprep.subr.mxu0 %v598
        %763 = vmatpush1.msra.mxu0 %v597
        %764 = vmatprep.subr.mxu0 %v600
        %765 = vmatpush1.msra.mxu0 %v599
        %766 = vmatprep.subr.mxu0 %v602
        %767 = vmatpush1.msra.mxu0 %v601
        %768 = vmatprep.subr.mxu0 %v604
        %769 = vmatpush1.msra.mxu0 %v603
        %770 = vmatprep.subr.mxu0 %v606
        %771 = vmatpush1.msra.mxu0 %v605
        %772 = vmatprep.subr.mxu0 %v608
        %773 = vmatpush1.msra.mxu0 %v607
        %774 = vmatprep.subr.mxu0 %v610
        %775 = vmatpush1.msra.mxu0 %v609
        %776 = vmatprep.subr.mxu0 %v612
        %777 = vmatpush1.msra.mxu0 %v611
        %778 = vmatprep.subr.mxu0 %v614
        %779 = vmatpush1.msra.mxu0 %v613
        %780 = vmatprep.subr.mxu0 %v616
        %781 = vmatpush1.msra.mxu0 %v615
        %782 = vmatprep.subr.mxu0 %v618
        %783 = vmatpush1.msra.mxu0 %v617
        %784 = vmatprep.subr.mxu0 %v620
        %785 = vmatpush1.msra.mxu0 %v619
        %786 = vmatprep.subr.mxu0 %v622
        %787 = vmatpush1.msra.mxu0 %v621
        %788 = vmatprep.subr.mxu0 %v624
        %789 = vmatpush1.msra.mxu0 %v623
        %790 = vmatprep.subr.mxu0 %v626
        %791 = vmatpush1.msra.mxu0 %v625
        %792 = vmatprep.subr.mxu0 %v628
        %793 = vmatpush1.msra.mxu0 %v627
        %794 = vmatprep.subr.mxu0 %v630
        %795 = vmatpush1.msra.mxu0 %v629
        %796 = vmatprep.subr.mxu0 %v632
        %797 = vmatpush1.msra.mxu0 %v631
        %798 = vmatprep.subr.mxu0 %v634
        %799 = vmatpush1.msra.mxu0 %v633
        %800 = vmatprep.subr.mxu0 %v636
        %801 = vmatpush1.msra.mxu0 %v635
        %802 = vmatprep.subr.mxu0 %v638
        %803 = vmatpush1.msra.mxu0 %v637
        %804 = vmatprep.subr.mxu0 %v640
        %805 = vmatpush1.msra.mxu0 %v639
        %806 = vmatprep.subr.mxu0 %v642
        %807 = vmatpush1.msra.mxu0 %v641
        %808 = vmatprep.subr.mxu0 %v644
        %809 = vmatpush1.msra.mxu0 %v643
        %810 = vmatprep.subr.mxu0 %v646
        %811 = vmatpush1.msra.mxu0 %v645
        %812 = vmatprep.subr.mxu0 %v648
        %813 = vmatpush1.msra.mxu0 %v647
        %814 = vmatprep.subr.mxu0 %v650
        %815 = vmatpush1.msra.mxu0 %v649
        %816 = vmatprep.subr.mxu0 %v652
        %817 = vmatpush1.msra.mxu0 %v651
        %818 = vmatprep.mubr.f32.mxu0 %v753
        %819 = vmatmul.mubr.f32.gmra.mrb[0].mxu0 %v746
        %v820 = vpop.f32.mrb[0].mxu0
        %v821 = vadd.f32 0.0, %v820
        %v822 = vpop.f32.mrb[0].mxu0
        %v823 = vadd.f32 0.0, %v822
        %824 = vdwg.mxu0
        %v825 = vadd.f32 %v821, 0.001
        %v826 = vadd.f32 %v823, 0.001
        %v827 = vrsqrt.pop %v825
        %v828 = vrsqrt.pop %v826
        %v829 = vlaneseq
        %v830 = vshrl.u32 %v829, 7
        %v831 = vsub.s32 0, %v830
        %v832 = vrot.slane %v827, %v831
        %v833 = vlaneseq
        %v834 = vshrl.u32 %v833, 7
        %v835 = vsub.s32 0, %v834
        %v836 = vrot.slane %v828, %v835
        %v837 = vmul.f32 %v732, %v832
        %v838 = vmul.f32 %v733, %v836
        %v839 = vmul.f32 %v734, %v832
        %v840 = vmul.f32 %v735, %v836
        %v841 = vlaneseq
        %v842 = vshrl.u32 %v841, 7
        %v843 = vsub.s32 0, %v842
        %v844 = vrot.slane %v430, %v843
        %v845 = vlaneseq
        %v846 = vshrl.u32 %v845, 7
        %v847 = vsub.s32 0, %v846
        %v848 = vrot.slane %v431, %v847
        %v849 = vmul.f32 %v837, %v844
        %v850 = vmul.f32 %v838, %v848
        %v851 = vmul.f32 %v839, %v844
        %v852 = vmul.f32 %v840, %v848
        %v853 = vlaneseq
        %v854 = vshrl.u32 %v853, 7
        %v855 = vsub.s32 1, %v854
        %v856 = vrot.slane %v430, %v855
        %v857 = vlaneseq
        %v858 = vshrl.u32 %v857, 7
        %v859 = vsub.s32 1, %v858
        %v860 = vrot.slane %v431, %v859
        %v861 = vadd.f32 %v849, %v856
        %v862 = vadd.f32 %v850, %v860
        %v863 = vadd.f32 %v851, %v856
        %v864 = vadd.f32 %v852, %v860
        %v865 = vmax.f32 %v861, 0.0
        %v866 = vmax.f32 %v862, 0.0
        %v867 = vmax.f32 %v863, 0.0
        %v868 = vmax.f32 %v864, 0.0
        %v869 = vadd.f32 %v865, %v867
        %v870 = vrot.slane %v869, 4
        %v871 = vadd.f32 %v869, %v870
        %v872 = vrot.slane %v871, 2
        %v873 = vadd.f32 %v871, %v872
        %v874 = vrot.slane %v873, 1
        %v875 = vadd.f32 %v873, %v874
        %v876 = vadd.f32 %v866, %v868
        %v877 = vrot.slane %v876, 4
        %v878 = vadd.f32 %v876, %v877
        %v879 = vrot.slane %v878, 2
        %v880 = vadd.f32 %v878, %v879
        %v881 = vrot.slane %v880, 1
        %v882 = vadd.f32 %v880, %v881
        %883 = vmatprep.subr.mxu0 %v590
        %884 = vmatpush1.msra.mxu0 %v589
        %885 = vmatprep.subr.mxu0 %v592
        %886 = vmatpush1.msra.mxu0 %v591
        %887 = vmatprep.subr.mxu0 %v594
        %888 = vmatpush1.msra.mxu0 %v593
        %889 = vmatprep.subr.mxu0 %v596
        %890 = vmatpush1.msra.mxu0 %v595
        %891 = vmatprep.subr.mxu0 %v598
        %892 = vmatpush1.msra.mxu0 %v597
        %893 = vmatprep.subr.mxu0 %v600
        %894 = vmatpush1.msra.mxu0 %v599
        %895 = vmatprep.subr.mxu0 %v602
        %896 = vmatpush1.msra.mxu0 %v601
        %897 = vmatprep.subr.mxu0 %v604
        %898 = vmatpush1.msra.mxu0 %v603
        %899 = vmatprep.subr.mxu0 %v606
        %900 = vmatpush1.msra.mxu0 %v605
        %901 = vmatprep.subr.mxu0 %v608
        %902 = vmatpush1.msra.mxu0 %v607
        %903 = vmatprep.subr.mxu0 %v610
        %904 = vmatpush1.msra.mxu0 %v609
        %905 = vmatprep.subr.mxu0 %v612
        %906 = vmatpush1.msra.mxu0 %v611
        %907 = vmatprep.subr.mxu0 %v614
        %908 = vmatpush1.msra.mxu0 %v613
        %909 = vmatprep.subr.mxu0 %v616
        %910 = vmatpush1.msra.mxu0 %v615
        %911 = vmatprep.subr.mxu0 %v618
        %912 = vmatpush1.msra.mxu0 %v617
        %913 = vmatprep.subr.mxu0 %v620
        %914 = vmatpush1.msra.mxu0 %v619
        %915 = vmatprep.subr.mxu0 %v622
        %916 = vmatpush1.msra.mxu0 %v621
        %917 = vmatprep.subr.mxu0 %v624
        %918 = vmatpush1.msra.mxu0 %v623
        %919 = vmatprep.subr.mxu0 %v626
        %920 = vmatpush1.msra.mxu0 %v625
        %921 = vmatprep.subr.mxu0 %v628
        %922 = vmatpush1.msra.mxu0 %v627
        %923 = vmatprep.subr.mxu0 %v630
        %924 = vmatpush1.msra.mxu0 %v629
        %925 = vmatprep.subr.mxu0 %v632
        %926 = vmatpush1.msra.mxu0 %v631
        %927 = vmatprep.subr.mxu0 %v634
        %928 = vmatpush1.msra.mxu0 %v633
        %929 = vmatprep.subr.mxu0 %v636
        %930 = vmatpush1.msra.mxu0 %v635
        %931 = vmatprep.subr.mxu0 %v638
        %932 = vmatpush1.msra.mxu0 %v637
        %933 = vmatprep.subr.mxu0 %v640
        %934 = vmatpush1.msra.mxu0 %v639
        %935 = vmatprep.subr.mxu0 %v642
        %936 = vmatpush1.msra.mxu0 %v641
        %937 = vmatprep.subr.mxu0 %v644
        %938 = vmatpush1.msra.mxu0 %v643
        %939 = vmatprep.subr.mxu0 %v646
        %940 = vmatpush1.msra.mxu0 %v645
        %941 = vmatprep.subr.mxu0 %v648
        %942 = vmatpush1.msra.mxu0 %v647
        %943 = vmatprep.subr.mxu0 %v650
        %944 = vmatpush1.msra.mxu0 %v649
        %945 = vmatprep.subr.mxu0 %v652
        %946 = vmatpush1.msra.mxu0 %v651
        %947 = vmatprep.mubr.f32.mxu0 %v882
        %948 = vmatmul.mubr.f32.gmra.mrb[0].mxu0 %v875
        %v949 = vpop.f32.mrb[0].mxu0
        %v950 = vadd.f32 0.0, %v949
        %v951 = vpop.f32.mrb[0].mxu0
        %v952 = vadd.f32 0.0, %v951
        %953 = vdwg.mxu0
        %v954 = vlaneseq
        %v955 = vshrl.u32 %v954, 7
        %v956 = vsub.s32 0, %v955
        %v957 = vrot.slane %v950, %v956
        %v958 = vlaneseq
        %v959 = vshrl.u32 %v958, 7
        %v960 = vsub.s32 0, %v959
        %v961 = vrot.slane %v952, %v960
        %v962 = vsub.f32 %v865, %v957
        %v963 = vsub.f32 %v866, %v961
        %v964 = vsub.f32 %v867, %v957
        %v965 = vsub.f32 %v868, %v961
        %v966 = vmul.f32 %v962, %v962
        %v967 = vmul.f32 %v963, %v963
        %v968 = vmul.f32 %v964, %v964
        %v969 = vmul.f32 %v965, %v965
        %v970 = vadd.f32 %v966, %v968
        %v971 = vrot.slane %v970, 4
        %v972 = vadd.f32 %v970, %v971
        %v973 = vrot.slane %v972, 2
        %v974 = vadd.f32 %v972, %v973
        %v975 = vrot.slane %v974, 1
        %v976 = vadd.f32 %v974, %v975
        %v977 = vadd.f32 %v967, %v969
        %v978 = vrot.slane %v977, 4
        %v979 = vadd.f32 %v977, %v978
        %v980 = vrot.slane %v979, 2
        %v981 = vadd.f32 %v979, %v980
        %v982 = vrot.slane %v981, 1
        %v983 = vadd.f32 %v981, %v982
        %984 = vmatprep.subr.mxu0 %v590
        %985 = vmatpush1.msra.mxu0 %v589
        %986 = vmatprep.subr.mxu0 %v592
        %987 = vmatpush1.msra.mxu0 %v591
        %988 = vmatprep.subr.mxu0 %v594
        %989 = vmatpush1.msra.mxu0 %v593
        %990 = vmatprep.subr.mxu0 %v596
        %991 = vmatpush1.msra.mxu0 %v595
        %992 = vmatprep.subr.mxu0 %v598
        %993 = vmatpush1.msra.mxu0 %v597
        %994 = vmatprep.subr.mxu0 %v600
        %995 = vmatpush1.msra.mxu0 %v599
        %996 = vmatprep.subr.mxu0 %v602
        %997 = vmatpush1.msra.mxu0 %v601
        %998 = vmatprep.subr.mxu0 %v604
        %999 = vmatpush1.msra.mxu0 %v603
        %1000 = vmatprep.subr.mxu0 %v606
        %1001 = vmatpush1.msra.mxu0 %v605
        %1002 = vmatprep.subr.mxu0 %v608
        %1003 = vmatpush1.msra.mxu0 %v607
        %1004 = vmatprep.subr.mxu0 %v610
        %1005 = vmatpush1.msra.mxu0 %v609
        %1006 = vmatprep.subr.mxu0 %v612
        %1007 = vmatpush1.msra.mxu0 %v611
        %1008 = vmatprep.subr.mxu0 %v614
        %1009 = vmatpush1.msra.mxu0 %v613
        %1010 = vmatprep.subr.mxu0 %v616
        %1011 = vmatpush1.msra.mxu0 %v615
        %1012 = vmatprep.subr.mxu0 %v618
        %1013 = vmatpush1.msra.mxu0 %v617
        %1014 = vmatprep.subr.mxu0 %v620
        %1015 = vmatpush1.msra.mxu0 %v619
        %1016 = vmatprep.subr.mxu0 %v622
        %1017 = vmatpush1.msra.mxu0 %v621
        %1018 = vmatprep.subr.mxu0 %v624
        %1019 = vmatpush1.msra.mxu0 %v623
        %1020 = vmatprep.subr.mxu0 %v626
        %1021 = vmatpush1.msra.mxu0 %v625
        %1022 = vmatprep.subr.mxu0 %v628
        %1023 = vmatpush1.msra.mxu0 %v627
        %1024 = vmatprep.subr.mxu0 %v630
        %1025 = vmatpush1.msra.mxu0 %v629
        %1026 = vmatprep.subr.mxu0 %v632
        %1027 = vmatpush1.msra.mxu0 %v631
        %1028 = vmatprep.subr.mxu0 %v634
        %1029 = vmatpush1.msra.mxu0 %v633
        %1030 = vmatprep.subr.mxu0 %v636
        %1031 = vmatpush1.msra.mxu0 %v635
        %1032 = vmatprep.subr.mxu0 %v638
        %1033 = vmatpush1.msra.mxu0 %v637
        %1034 = vmatprep.subr.mxu0 %v640
        %1035 = vmatpush1.msra.mxu0 %v639
        %1036 = vmatprep.subr.mxu0 %v642
        %1037 = vmatpush1.msra.mxu0 %v641
        %1038 = vmatprep.subr.mxu0 %v644
        %1039 = vmatpush1.msra.mxu0 %v643
        %1040 = vmatprep.subr.mxu0 %v646
        %1041 = vmatpush1.msra.mxu0 %v645
        %1042 = vmatprep.subr.mxu0 %v648
        %1043 = vmatpush1.msra.mxu0 %v647
        %1044 = vmatprep.subr.mxu0 %v650
        %1045 = vmatpush1.msra.mxu0 %v649
        %1046 = vmatprep.subr.mxu0 %v652
        %1047 = vmatpush1.msra.mxu0 %v651
        %1048 = vmatprep.mubr.f32.mxu0 %v983
        %1049 = vmatmul.mubr.f32.gmra.mrb[0].mxu0 %v976
        %v1050 = vpop.f32.mrb[0].mxu0
        %v1051 = vadd.f32 0.0, %v1050
        %v1052 = vpop.f32.mrb[0].mxu0
        %v1053 = vadd.f32 0.0, %v1052
        %1054 = vdwg.mxu0
        %v1055 = vadd.f32 %v1051, 0.001
        %v1056 = vadd.f32 %v1053, 0.001
        %v1057 = vrsqrt.pop %v1055
        %v1058 = vrsqrt.pop %v1056
        %v1059 = vlaneseq
        %v1060 = vshrl.u32 %v1059, 7
        %v1061 = vsub.s32 0, %v1060
        %v1062 = vrot.slane %v1057, %v1061
        %v1063 = vlaneseq
        %v1064 = vshrl.u32 %v1063, 7
        %v1065 = vsub.s32 0, %v1064
        %v1066 = vrot.slane %v1058, %v1065
        %v1067 = vmul.f32 %v962, %v1062
        %v1068 = vmul.f32 %v963, %v1066
        %v1069 = vmul.f32 %v964, %v1062
        %v1070 = vmul.f32 %v965, %v1066
        %v1071 = vlaneseq
        %v1072 = vshrl.u32 %v1071, 7
        %v1073 = vsub.s32 2, %v1072
        %v1074 = vrot.slane %v430, %v1073
        %v1075 = vlaneseq
        %v1076 = vshrl.u32 %v1075, 7
        %v1077 = vsub.s32 2, %v1076
        %v1078 = vrot.slane %v431, %v1077
        %v1079 = vmul.f32 %v1067, %v1074
        %v1080 = vmul.f32 %v1068, %v1078
        %v1081 = vmul.f32 %v1069, %v1074
        %v1082 = vmul.f32 %v1070, %v1078
        %v1083 = vlaneseq
        %v1084 = vshrl.u32 %v1083, 7
        %v1085 = vsub.s32 3, %v1084
        %v1086 = vrot.slane %v430, %v1085
        %v1087 = vlaneseq
        %v1088 = vshrl.u32 %v1087, 7
        %v1089 = vsub.s32 3, %v1088
        %v1090 = vrot.slane %v431, %v1089
        %v1091 = vadd.f32 %v1079, %v1086
        %v1092 = vadd.f32 %v1080, %v1090
        %v1093 = vadd.f32 %v1081, %v1086
        %v1094 = vadd.f32 %v1082, %v1090
        %v1095 = vmax.f32 %v1091, 0.0
        %v1096 = vmax.f32 %v1092, 0.0
        %v1097 = vmax.f32 %v1093, 0.0
        %v1098 = vmax.f32 %v1094, 0.0
        %v1099 = vld [vmem:[#allocation10] sm:$0xff]
        %v1100 = vld [vmem:[#allocation10 + $0x8] sm:$0xff]
        %v1101 = vld [vmem:[#allocation10 + $0x10] sm:$0xff]
        %v1102 = vld [vmem:[#allocation10 + $0x18] sm:$0xff]
        %v1103 = vld [vmem:[#allocation10 + $0x20] sm:$0xff]
        %v1104 = vld [vmem:[#allocation10 + $0x28] sm:$0xff]
        %v1105 = vld [vmem:[#allocation10 + $0x30] sm:$0xff]
        %v1106 = vld [vmem:[#allocation10 + $0x38] sm:$0xff]
        %v1107 = vld [vmem:[#allocation10 + $0x40] sm:$0xff]
        %v1108 = vld [vmem:[#allocation10 + $0x48] sm:$0xff]
        %v1109 = vld [vmem:[#allocation10 + $0x50] sm:$0xff]
        %v1110 = vld [vmem:[#allocation10 + $0x58] sm:$0xff]
        %v1111 = vld [vmem:[#allocation10 + $0x60] sm:$0xff]
        %v1112 = vld [vmem:[#allocation10 + $0x68] sm:$0xff]
        %v1113 = vld [vmem:[#allocation10 + $0x70] sm:$0xff]
        %v1114 = vld [vmem:[#allocation10 + $0x78] sm:$0xff]
        %v1115 = vld [vmem:[#allocation10 + $0x80] sm:$0xff]
        %v1116 = vld [vmem:[#allocation10 + $0x88] sm:$0xff]
        %v1117 = vld [vmem:[#allocation10 + $0x90] sm:$0xff]
        %v1118 = vld [vmem:[#allocation10 + $0x98] sm:$0xff]
        %v1119 = vld [vmem:[#allocation10 + $0xa0] sm:$0xff]
        %v1120 = vld [vmem:[#allocation10 + $0xa8] sm:$0xff]
        %v1121 = vld [vmem:[#allocation10 + $0xb0] sm:$0xff]
        %v1122 = vld [vmem:[#allocation10 + $0xb8] sm:$0xff]
        %v1123 = vld [vmem:[#allocation10 + $0xc0] sm:$0xff]
        %v1124 = vld [vmem:[#allocation10 + $0xc8] sm:$0xff]
        %v1125 = vld [vmem:[#allocation10 + $0xd0] sm:$0xff]
        %v1126 = vld [vmem:[#allocation10 + $0xd8] sm:$0xff]
        %v1127 = vld [vmem:[#allocation10 + $0xe0] sm:$0xff]
        %v1128 = vld [vmem:[#allocation10 + $0xe8] sm:$0xff]
        %v1129 = vld [vmem:[#allocation10 + $0xf0] sm:$0xff]
        %v1130 = vld [vmem:[#allocation10 + $0xf8] sm:$0xff]
        %v1131 = vld [vmem:[#allocation10 + $0x100] sm:$0xff]
        %v1132 = vld [vmem:[#allocation10 + $0x108] sm:$0xff]
        %v1133 = vld [vmem:[#allocation10 + $0x110] sm:$0xff]
        %v1134 = vld [vmem:[#allocation10 + $0x118] sm:$0xff]
        %v1135 = vld [vmem:[#allocation10 + $0x120] sm:$0xff]
        %v1136 = vld [vmem:[#allocation10 + $0x128] sm:$0xff]
        %v1137 = vld [vmem:[#allocation10 + $0x130] sm:$0xff]
        %v1138 = vld [vmem:[#allocation10 + $0x138] sm:$0xff]
        %v1139 = vld [vmem:[#allocation10 + $0x140] sm:$0xff]
        %v1140 = vld [vmem:[#allocation10 + $0x148] sm:$0xff]
        %v1141 = vld [vmem:[#allocation10 + $0x150] sm:$0xff]
        %v1142 = vld [vmem:[#allocation10 + $0x158] sm:$0xff]
        %v1143 = vld [vmem:[#allocation10 + $0x160] sm:$0xff]
        %v1144 = vld [vmem:[#allocation10 + $0x168] sm:$0xff]
        %v1145 = vld [vmem:[#allocation10 + $0x170] sm:$0xff]
        %v1146 = vld [vmem:[#allocation10 + $0x178] sm:$0xff]
        %v1147 = vld [vmem:[#allocation10 + $0x180] sm:$0xff]
        %v1148 = vld [vmem:[#allocation10 + $0x188] sm:$0xff]
        %v1149 = vld [vmem:[#allocation10 + $0x190] sm:$0xff]
        %v1150 = vld [vmem:[#allocation10 + $0x198] sm:$0xff]
        %v1151 = vld [vmem:[#allocation10 + $0x1a0] sm:$0xff]
        %v1152 = vld [vmem:[#allocation10 + $0x1a8] sm:$0xff]
        %v1153 = vld [vmem:[#allocation10 + $0x1b0] sm:$0xff]
        %v1154 = vld [vmem:[#allocation10 + $0x1b8] sm:$0xff]
        %v1155 = vld [vmem:[#allocation10 + $0x1c0] sm:$0xff]
        %v1156 = vld [vmem:[#allocation10 + $0x1c8] sm:$0xff]
        %v1157 = vld [vmem:[#allocation10 + $0x1d0] sm:$0xff]
        %v1158 = vld [vmem:[#allocation10 + $0x1d8] sm:$0xff]
        %v1159 = vld [vmem:[#allocation10 + $0x1e0] sm:$0xff]
        %v1160 = vld [vmem:[#allocation10 + $0x1e8] sm:$0xff]
        %v1161 = vld [vmem:[#allocation10 + $0x1f0] sm:$0xff]
        %v1162 = vld [vmem:[#allocation10 + $0x1f8] sm:$0xff]
        %1163 = vmatprep.subr.mxu0 %v1100
        %1164 = vmatpush1.msra.mxu0 %v1099
        %1165 = vmatprep.subr.mxu0 %v1102
        %1166 = vmatpush1.msra.mxu0 %v1101
        %1167 = vmatprep.subr.mxu0 %v1104
        %1168 = vmatpush1.msra.mxu0 %v1103
        %1169 = vmatprep.subr.mxu0 %v1106
        %1170 = vmatpush1.msra.mxu0 %v1105
        %1171 = vmatprep.subr.mxu0 %v1108
        %1172 = vmatpush1.msra.mxu0 %v1107
        %1173 = vmatprep.subr.mxu0 %v1110
        %1174 = vmatpush1.msra.mxu0 %v1109
        %1175 = vmatprep.subr.mxu0 %v1112
        %1176 = vmatpush1.msra.mxu0 %v1111
        %1177 = vmatprep.subr.mxu0 %v1114
        %1178 = vmatpush1.msra.mxu0 %v1113
        %1179 = vmatprep.subr.mxu0 %v1116
        %1180 = vmatpush1.msra.mxu0 %v1115
        %1181 = vmatprep.subr.mxu0 %v1118
        %1182 = vmatpush1.msra.mxu0 %v1117
        %1183 = vmatprep.subr.mxu0 %v1120
        %1184 = vmatpush1.msra.mxu0 %v1119
        %1185 = vmatprep.subr.mxu0 %v1122
        %1186 = vmatpush1.msra.mxu0 %v1121
        %1187 = vmatprep.subr.mxu0 %v1124
        %1188 = vmatpush1.msra.mxu0 %v1123
        %1189 = vmatprep.subr.mxu0 %v1126
        %1190 = vmatpush1.msra.mxu0 %v1125
        %1191 = vmatprep.subr.mxu0 %v1128
        %1192 = vmatpush1.msra.mxu0 %v1127
        %1193 = vmatprep.subr.mxu0 %v1130
        %1194 = vmatpush1.msra.mxu0 %v1129
        %1195 = vmatprep.subr.mxu0 %v1132
        %1196 = vmatpush1.msra.mxu0 %v1131
        %1197 = vmatprep.subr.mxu0 %v1134
        %1198 = vmatpush1.msra.mxu0 %v1133
        %1199 = vmatprep.subr.mxu0 %v1136
        %1200 = vmatpush1.msra.mxu0 %v1135
        %1201 = vmatprep.subr.mxu0 %v1138
        %1202 = vmatpush1.msra.mxu0 %v1137
        %1203 = vmatprep.subr.mxu0 %v1140
        %1204 = vmatpush1.msra.mxu0 %v1139
        %1205 = vmatprep.subr.mxu0 %v1142
        %1206 = vmatpush1.msra.mxu0 %v1141
        %1207 = vmatprep.subr.mxu0 %v1144
        %1208 = vmatpush1.msra.mxu0 %v1143
        %1209 = vmatprep.subr.mxu0 %v1146
        %1210 = vmatpush1.msra.mxu0 %v1145
        %1211 = vmatprep.subr.mxu0 %v1148
        %1212 = vmatpush1.msra.mxu0 %v1147
        %1213 = vmatprep.subr.mxu0 %v1150
        %1214 = vmatpush1.msra.mxu0 %v1149
        %1215 = vmatprep.subr.mxu0 %v1152
        %1216 = vmatpush1.msra.mxu0 %v1151
        %1217 = vmatprep.subr.mxu0 %v1154
        %1218 = vmatpush1.msra.mxu0 %v1153
        %1219 = vmatprep.subr.mxu0 %v1156
        %1220 = vmatpush1.msra.mxu0 %v1155
        %1221 = vmatprep.subr.mxu0 %v1158
        %1222 = vmatpush1.msra.mxu0 %v1157
        %1223 = vmatprep.subr.mxu0 %v1160
        %1224 = vmatpush1.msra.mxu0 %v1159
        %1225 = vmatprep.subr.mxu0 %v1162
        %1226 = vmatpush1.msra.mxu0 %v1161
        %1227 = vmatprep.mubr.f32.mxu0 %v1096
        %1228 = vmatmul.mubr.f32.gmra.mrb[0].mxu0 %v1095
        %v1229 = vpop.f32.mrb[0].mxu0
        %v1230 = vadd.f32 0.0, %v1229
        %v1231 = vpop.f32.mrb[0].mxu0
        %v1232 = vadd.f32 0.0, %v1231
        %1233 = vmatprep.mubr.f32.mxu0 %v1098
        %1234 = vmatmul.mubr.f32.gmra.mrb[0].mxu0 %v1097
        %v1235 = vpop.f32.mrb[0].mxu0
        %v1236 = vadd.f32 0.0, %v1235
        %v1237 = vpop.f32.mrb[0].mxu0
        %v1238 = vadd.f32 0.0, %v1237
        %1239 = vdwg.mxu0
        %v1240 = vlaneseq
        %v1241 = vshrl.u32 %v1240, 7
        %v1242 = vsub.s32 4, %v1241
        %v1243 = vrot.slane %v430, %v1242
        %v1244 = vlaneseq
        %v1245 = vshrl.u32 %v1244, 7
        %v1246 = vsub.s32 4, %v1245
        %v1247 = vrot.slane %v431, %v1246
        %v1248 = vadd.f32 %v1230, %v1243
        %v1249 = vadd.f32 %v1232, %v1247
        %v1250 = vadd.f32 %v1236, %v1243
        %v1251 = vadd.f32 %v1238, %v1247
        %v1252 = vmax.f32 %v1248, 0.0
        %v1253 = vmax.f32 %v1249, 0.0
        %v1254 = vmax.f32 %v1250, 0.0
        %v1255 = vmax.f32 %v1251, 0.0
        %v1256 = vtanh.pop %v1252
        %v1257 = vtanh.pop %v1253
        %v1258 = vtanh.pop %v1254
        %v1259 = vtanh.pop %v1255
        %v1260 = vand.u32 2147483647, %v1256
        %v1261 = vand.u32 2147483647, %v1257
        %v1262 = vand.u32 2147483647, %v1258
        %v1263 = vand.u32 2147483647, %v1259
        %v1264 = vadd.f32 %v1260, %v1262
        %v1265 = vrot.slane %v1264, 4
        %v1266 = vadd.f32 %v1264, %v1265
        %v1267 = vrot.slane %v1266, 2
        %v1268 = vadd.f32 %v1266, %v1267
        %v1269 = vrot.slane %v1268, 1
        %v1270 = vadd.f32 %v1268, %v1269
        %v1271 = vadd.f32 %v1261, %v1263
        %v1272 = vrot.slane %v1271, 4
        %v1273 = vadd.f32 %v1271, %v1272
        %v1274 = vrot.slane %v1273, 2
        %v1275 = vadd.f32 %v1273, %v1274
        %v1276 = vrot.slane %v1275, 1
        %v1277 = vadd.f32 %v1275, %v1276
        %v1278 = vmax.f32 %v1270, 1e-12
        %v1279 = vmax.f32 %v1277, 1e-12
        %v1280 = vrcp.pop %v1278
        %v1281 = vmul.f32 %v1256, %v1280
        %v1282 = vrcp.pop %v1279
        %v1283 = vmul.f32 %v1257, %v1282
        %v1284 = vmul.f32 %v1258, %v1280
        %v1285 = vmul.f32 %v1259, %v1282
        %v1286 = vmul.f32 %v865, %v1281
        %v1287 = vmul.f32 %v866, %v1283
        %v1288 = vmul.f32 %v867, %v1284
        %v1289 = vmul.f32 %v868, %v1285
        %v1290 = vadd.f32 %v1286, %v1288
        %v1291 = vrot.slane %v1290, 4
        %v1292 = vadd.f32 %v1290, %v1291
        %v1293 = vrot.slane %v1292, 2
        %v1294 = vadd.f32 %v1292, %v1293
        %v1295 = vrot.slane %v1294, 1
        %v1296 = vadd.f32 %v1294, %v1295
        %v1297 = vadd.f32 %v1287, %v1289
        %v1298 = vrot.slane %v1297, 4
        %v1299 = vadd.f32 %v1297, %v1298
        %v1300 = vrot.slane %v1299, 2
        %v1301 = vadd.f32 %v1299, %v1300
        %v1302 = vrot.slane %v1301, 1
        %v1303 = vadd.f32 %v1301, %v1302
        %v1304 = vld [vmem:[#allocation11] sm:$0xff]
        %v1305 = vld [vmem:[#allocation11 + $0x8] sm:$0xff]
        %v1306 = vld [vmem:[#allocation11 + $0x10] sm:$0xff]
        %v1307 = vld [vmem:[#allocation11 + $0x18] sm:$0xff]
        %v1308 = vld [vmem:[#allocation11 + $0x20] sm:$0xff]
        %v1309 = vld [vmem:[#allocation11 + $0x28] sm:$0xff]
        %v1310 = vld [vmem:[#allocation11 + $0x30] sm:$0xff]
        %v1311 = vld [vmem:[#allocation11 + $0x38] sm:$0xff]
        %v1312 = vld [vmem:[#allocation11 + $0x40] sm:$0xff]
        %v1313 = vld [vmem:[#allocation11 + $0x48] sm:$0xff]
        %v1314 = vld [vmem:[#allocation11 + $0x50] sm:$0xff]
        %v1315 = vld [vmem:[#allocation11 + $0x58] sm:$0xff]
        %v1316 = vld [vmem:[#allocation11 + $0x60] sm:$0xff]
        %v1317 = vld [vmem:[#allocation11 + $0x68] sm:$0xff]
        %v1318 = vld [vmem:[#allocation11 + $0x70] sm:$0xff]
        %v1319 = vld [vmem:[#allocation11 + $0x78] sm:$0xff]
        %v1320 = vld [vmem:[#allocation11 + $0x80] sm:$0xff]
        %v1321 = vld [vmem:[#allocation11 + $0x88] sm:$0xff]
        %v1322 = vld [vmem:[#allocation11 + $0x90] sm:$0xff]
        %v1323 = vld [vmem:[#allocation11 + $0x98] sm:$0xff]
        %v1324 = vld [vmem:[#allocation11 + $0xa0] sm:$0xff]
        %v1325 = vld [vmem:[#allocation11 + $0xa8] sm:$0xff]
        %v1326 = vld [vmem:[#allocation11 + $0xb0] sm:$0xff]
        %v1327 = vld [vmem:[#allocation11 + $0xb8] sm:$0xff]
        %v1328 = vld [vmem:[#allocation11 + $0xc0] sm:$0xff]
        %v1329 = vld [vmem:[#allocation11 + $0xc8] sm:$0xff]
        %v1330 = vld [vmem:[#allocation11 + $0xd0] sm:$0xff]
        %v1331 = vld [vmem:[#allocation11 + $0xd8] sm:$0xff]
        %v1332 = vld [vmem:[#allocation11 + $0xe0] sm:$0xff]
        %v1333 = vld [vmem:[#allocation11 + $0xe8] sm:$0xff]
        %v1334 = vld [vmem:[#allocation11 + $0xf0] sm:$0xff]
        %v1335 = vld [vmem:[#allocation11 + $0xf8] sm:$0xff]
        %1336 = vmatprep.subr.mxu0 0.0
        %1337 = vmatpush1.msra.mxu0 %v1304
        %1338 = vmatprep.subr.mxu0 0.0
        %1339 = vmatpush1.msra.mxu0 %v1305
        %1340 = vmatprep.subr.mxu0 0.0
        %1341 = vmatpush1.msra.mxu0 %v1306
        %1342 = vmatprep.subr.mxu0 0.0
        %1343 = vmatpush1.msra.mxu0 %v1307
        %1344 = vmatprep.subr.mxu0 0.0
        %1345 = vmatpush1.msra.mxu0 %v1308
        %1346 = vmatprep.subr.mxu0 0.0
        %1347 = vmatpush1.msra.mxu0 %v1309
        %1348 = vmatprep.subr.mxu0 0.0
        %1349 = vmatpush1.msra.mxu0 %v1310
        %1350 = vmatprep.subr.mxu0 0.0
        %1351 = vmatpush1.msra.mxu0 %v1311
        %1352 = vmatprep.subr.mxu0 0.0
        %1353 = vmatpush1.msra.mxu0 %v1312
        %1354 = vmatprep.subr.mxu0 0.0
        %1355 = vmatpush1.msra.mxu0 %v1313
        %1356 = vmatprep.subr.mxu0 0.0
        %1357 = vmatpush1.msra.mxu0 %v1314
        %1358 = vmatprep.subr.mxu0 0.0
        %1359 = vmatpush1.msra.mxu0 %v1315
        %1360 = vmatprep.subr.mxu0 0.0
        %1361 = vmatpush1.msra.mxu0 %v1316
        %1362 = vmatprep.subr.mxu0 0.0
        %1363 = vmatpush1.msra.mxu0 %v1317
        %1364 = vmatprep.subr.mxu0 0.0
        %1365 = vmatpush1.msra.mxu0 %v1318
        %1366 = vmatprep.subr.mxu0 0.0
        %1367 = vmatpush1.msra.mxu0 %v1319
        %1368 = vmatprep.subr.mxu0 0.0
        %1369 = vmatpush1.msra.mxu0 %v1320
        %1370 = vmatprep.subr.mxu0 0.0
        %1371 = vmatpush1.msra.mxu0 %v1321
        %1372 = vmatprep.subr.mxu0 0.0
        %1373 = vmatpush1.msra.mxu0 %v1322
        %1374 = vmatprep.subr.mxu0 0.0
        %1375 = vmatpush1.msra.mxu0 %v1323
        %1376 = vmatprep.subr.mxu0 0.0
        %1377 = vmatpush1.msra.mxu0 %v1324
        %1378 = vmatprep.subr.mxu0 0.0
        %1379 = vmatpush1.msra.mxu0 %v1325
        %1380 = vmatprep.subr.mxu0 0.0
        %1381 = vmatpush1.msra.mxu0 %v1326
        %1382 = vmatprep.subr.mxu0 0.0
        %1383 = vmatpush1.msra.mxu0 %v1327
        %1384 = vmatprep.subr.mxu0 0.0
        %1385 = vmatpush1.msra.mxu0 %v1328
        %1386 = vmatprep.subr.mxu0 0.0
        %1387 = vmatpush1.msra.mxu0 %v1329
        %1388 = vmatprep.subr.mxu0 0.0
        %1389 = vmatpush1.msra.mxu0 %v1330
        %1390 = vmatprep.subr.mxu0 0.0
        %1391 = vmatpush1.msra.mxu0 %v1331
        %1392 = vmatprep.subr.mxu0 0.0
        %1393 = vmatpush1.msra.mxu0 %v1332
        %1394 = vmatprep.subr.mxu0 0.0
        %1395 = vmatpush1.msra.mxu0 %v1333
        %1396 = vmatprep.subr.mxu0 0.0
        %1397 = vmatpush1.msra.mxu0 %v1334
        %1398 = vmatprep.subr.mxu0 0.0
        %1399 = vmatpush1.msra.mxu0 %v1335
        %1400 = vmatprep.mubr.f32.mxu0 %v1303
        %1401 = vmatmul.mubr.f32.gmra.mrb[0].mxu0 %v1296
        %v1402 = vpop.f32.mrb[0].mxu0
        %v1403 = vadd.f32 0.0, %v1402
        %v1404 = vpop.f32.mrb[0].mxu0
        %1405 = vdwg.mxu0
        %v1407 = vrot.slane %v430, 5
        %v1409 = vmul.f32 %v1403, %v1407
        %v1410 = vrot.slane %v430, 6
        %v1412 = vadd.f32 %v1409, %v1410
        %v1413 = vmax.f32 %v1412, 0.0
        %v1414 = vld [vmem:[#allocation13] sm:$0xff]
        %v1415 = vld [vmem:[#allocation13 + $0x8] sm:$0xff]
        %v1416 = vld [vmem:[#allocation13 + $0x10] sm:$0xff]
        %v1417 = vld [vmem:[#allocation13 + $0x18] sm:$0xff]
        %v1418 = vld [vmem:[#allocation13 + $0x20] sm:$0xff]
        %v1419 = vld [vmem:[#allocation13 + $0x28] sm:$0xff]
        %v1420 = vld [vmem:[#allocation13 + $0x30] sm:$0xff]
        %v1421 = vld [vmem:[#allocation13 + $0x38] sm:$0xff]
        %v1422 = vld [vmem:[#allocation13 + $0x40] sm:$0xff]
        %v1423 = vld [vmem:[#allocation13 + $0x48] sm:$0xff]
        %v1424 = vld [vmem:[#allocation13 + $0x50] sm:$0xff]
        %v1425 = vld [vmem:[#allocation13 + $0x58] sm:$0xff]
        %v1426 = vld [vmem:[#allocation13 + $0x60] sm:$0xff]
        %v1427 = vld [vmem:[#allocation13 + $0x68] sm:$0xff]
        %v1428 = vld [vmem:[#allocation13 + $0x70] sm:$0xff]
        %v1429 = vld [vmem:[#allocation13 + $0x78] sm:$0xff]
        %v1430 = vld [vmem:[#allocation13 + $0x80] sm:$0xff]
        %v1431 = vld [vmem:[#allocation13 + $0x88] sm:$0xff]
        %v1432 = vld [vmem:[#allocation13 + $0x90] sm:$0xff]
        %v1433 = vld [vmem:[#allocation13 + $0x98] sm:$0xff]
        %v1434 = vld [vmem:[#allocation13 + $0xa0] sm:$0xff]
        %v1435 = vld [vmem:[#allocation13 + $0xa8] sm:$0xff]
        %v1436 = vld [vmem:[#allocation13 + $0xb0] sm:$0xff]
        %v1437 = vld [vmem:[#allocation13 + $0xb8] sm:$0xff]
        %v1438 = vld [vmem:[#allocation13 + $0xc0] sm:$0xff]
        %v1439 = vld [vmem:[#allocation13 + $0xc8] sm:$0xff]
        %v1440 = vld [vmem:[#allocation13 + $0xd0] sm:$0xff]
        %v1441 = vld [vmem:[#allocation13 + $0xd8] sm:$0xff]
        %v1442 = vld [vmem:[#allocation13 + $0xe0] sm:$0xff]
        %v1443 = vld [vmem:[#allocation13 + $0xe8] sm:$0xff]
        %v1444 = vld [vmem:[#allocation13 + $0xf0] sm:$0xff]
        %v1445 = vld [vmem:[#allocation13 + $0xf8] sm:$0xff]
        %v1447 = vrot.slane %v430, 7
        %v1448 = vrot.slane %v431, 7
        %1451 = vmatprep.subr.mxu0 %v1415
        %1452 = vmatpush1.msra.mxu0 %v1414
        %1453 = vmatprep.subr.mxu0 %v1417
        %1454 = vmatpush1.msra.mxu0 %v1416
        %1455 = vmatprep.subr.mxu0 %v1419
        %1456 = vmatpush1.msra.mxu0 %v1418
        %1457 = vmatprep.subr.mxu0 %v1421
        %1458 = vmatpush1.msra.mxu0 %v1420
        %1459 = vmatprep.subr.mxu0 %v1423
        %1460 = vmatpush1.msra.mxu0 %v1422
        %1461 = vmatprep.subr.mxu0 %v1425
        %1462 = vmatpush1.msra.mxu0 %v1424
        %1463 = vmatprep.subr.mxu0 %v1427
        %1464 = vmatpush1.msra.mxu0 %v1426
        %1465 = vmatprep.subr.mxu0 %v1429
        %1466 = vmatpush1.msra.mxu0 %v1428
        %1467 = vmatprep.subr.mxu0 %v1431
        %1468 = vmatpush1.msra.mxu0 %v1430
        %1469 = vmatprep.subr.mxu0 %v1433
        %1470 = vmatpush1.msra.mxu0 %v1432
        %1471 = vmatprep.subr.mxu0 %v1435
        %1472 = vmatpush1.msra.mxu0 %v1434
        %1473 = vmatprep.subr.mxu0 %v1437
        %1474 = vmatpush1.msra.mxu0 %v1436
        %1475 = vmatprep.subr.mxu0 %v1439
        %1476 = vmatpush1.msra.mxu0 %v1438
        %1477 = vmatprep.subr.mxu0 %v1441
        %1478 = vmatpush1.msra.mxu0 %v1440
        %1479 = vmatprep.subr.mxu0 %v1443
        %1480 = vmatpush1.msra.mxu0 %v1442
        %1481 = vmatprep.subr.mxu0 %v1445
        %1482 = vmatpush1.msra.mxu0 %v1444
        %1483 = vmatprep.subr.mxu0 0.0
        %1484 = vmatpush1.msra.mxu0 0.0
        %1485 = vmatprep.subr.mxu0 0.0
        %1486 = vmatpush1.msra.mxu0 0.0
        %1487 = vmatprep.subr.mxu0 0.0
        %1488 = vmatpush1.msra.mxu0 0.0
        %1489 = vmatprep.subr.mxu0 0.0
        %1490 = vmatpush1.msra.mxu0 0.0
        %1491 = vmatprep.subr.mxu0 0.0
        %1492 = vmatpush1.msra.mxu0 0.0
        %1493 = vmatprep.subr.mxu0 0.0
        %1494 = vmatpush1.msra.mxu0 0.0
        %1495 = vmatprep.subr.mxu0 0.0
        %1496 = vmatpush1.msra.mxu0 0.0
        %1497 = vmatprep.subr.mxu0 0.0
        %1498 = vmatpush1.msra.mxu0 0.0
        %1499 = vmatprep.subr.mxu0 0.0
        %1500 = vmatpush1.msra.mxu0 0.0
        %1501 = vmatprep.subr.mxu0 0.0
        %1502 = vmatpush1.msra.mxu0 0.0
        %1503 = vmatprep.subr.mxu0 0.0
        %1504 = vmatpush1.msra.mxu0 0.0
        %1505 = vmatprep.subr.mxu0 0.0
        %1506 = vmatpush1.msra.mxu0 0.0
        %1507 = vmatprep.subr.mxu0 0.0
        %1508 = vmatpush1.msra.mxu0 0.0
        %1509 = vmatprep.subr.mxu0 0.0
        %1510 = vmatpush1.msra.mxu0 0.0
        %1511 = vmatprep.subr.mxu0 0.0
        %1512 = vmatpush1.msra.mxu0 0.0
        %1513 = vmatprep.subr.mxu0 0.0
        %1514 = vmatpush1.msra.mxu0 0.0
        %1515 = vmatprep.mubr.f32.mxu0 0.0
        %1516 = vmatmul.mubr.f32.gmra.mrb[0].mxu0 %v1413
        %v1517 = vpop.f32.mrb[0].mxu0
        %v1518 = vadd.f32 %v1447, %v1517
        %v1519 = vpop.f32.mrb[0].mxu0
        %v1520 = vadd.f32 %v1448, %v1519
        %1521 = vdwg.mxu0
        %v1522 = vxor.u32 %v1518, 2147483648
        %v1523 = vxor.u32 %v1520, 2147483648
        %v1524 = vmul.f32 %v1522, 1.442695
        %v1525 = vpow.pop %v1524
        %v1526 = vmul.f32 %v1523, 1.442695
        %v1527 = vpow.pop %v1526
        %v1528 = vadd.f32 %v1525, 1.0
        %v1529 = vadd.f32 %v1527, 1.0
        %v1530 = vrcp.pop %v1528
        %v1531 = vmul.f32 1.0, %v1530
        %v1532 = vrcp.pop %v1529
        %v1533 = vmul.f32 1.0, %v1532
        %v1534 = vlaneseq
        %v1535 = vshrl.u32 %v1534, 7
        %v1536 = vsub.s32 0, %v1535
        %v1537 = vrot.slane %v1531, %v1536
        %v1538 = vlaneseq
        %v1539 = vshrl.u32 %v1538, 7
        %v1540 = vsub.s32 0, %v1539
        %v1541 = vrot.slane %v1533, %v1540
        %v1542 = vmul.f32 %v865, %v1537
        %v1543 = vmul.f32 %v866, %v1541
        %v1544 = vmul.f32 %v867, %v1537
        %v1545 = vmul.f32 %v868, %v1541
        %v1546 = vld [vmem:[#allocation14] sm:$0xff]
        %v1547 = vld [vmem:[#allocation14 + $0x8] sm:$0xff]
        %v1548 = vld [vmem:[#allocation14 + $0x10] sm:$0xff]
        %v1549 = vld [vmem:[#allocation14 + $0x18] sm:$0xff]
        %v1550 = vld [vmem:[#allocation14 + $0x20] sm:$0xff]
        %v1551 = vld [vmem:[#allocation14 + $0x28] sm:$0xff]
        %v1552 = vld [vmem:[#allocation14 + $0x30] sm:$0xff]
        %v1553 = vld [vmem:[#allocation14 + $0x38] sm:$0xff]
        %v1554 = vld [vmem:[#allocation14 + $0x40] sm:$0xff]
        %v1555 = vld [vmem:[#allocation14 + $0x48] sm:$0xff]
        %v1556 = vld [vmem:[#allocation14 + $0x50] sm:$0xff]
        %v1557 = vld [vmem:[#allocation14 + $0x58] sm:$0xff]
        %v1558 = vld [vmem:[#allocation14 + $0x60] sm:$0xff]
        %v1559 = vld [vmem:[#allocation14 + $0x68] sm:$0xff]
        %v1560 = vld [vmem:[#allocation14 + $0x70] sm:$0xff]
        %v1561 = vld [vmem:[#allocation14 + $0x78] sm:$0xff]
        %v1562 = vld [vmem:[#allocation14 + $0x80] sm:$0xff]
        %v1563 = vld [vmem:[#allocation14 + $0x88] sm:$0xff]
        %v1564 = vld [vmem:[#allocation14 + $0x90] sm:$0xff]
        %v1565 = vld [vmem:[#allocation14 + $0x98] sm:$0xff]
        %v1566 = vld [vmem:[#allocation14 + $0xa0] sm:$0xff]
        %v1567 = vld [vmem:[#allocation14 + $0xa8] sm:$0xff]
        %v1568 = vld [vmem:[#allocation14 + $0xb0] sm:$0xff]
        %v1569 = vld [vmem:[#allocation14 + $0xb8] sm:$0xff]
        %v1570 = vld [vmem:[#allocation14 + $0xc0] sm:$0xff]
        %v1571 = vld [vmem:[#allocation14 + $0xc8] sm:$0xff]
        %v1572 = vld [vmem:[#allocation14 + $0xd0] sm:$0xff]
        %v1573 = vld [vmem:[#allocation14 + $0xd8] sm:$0xff]
        %v1574 = vld [vmem:[#allocation14 + $0xe0] sm:$0xff]
        %v1575 = vld [vmem:[#allocation14 + $0xe8] sm:$0xff]
        %v1576 = vld [vmem:[#allocation14 + $0xf0] sm:$0xff]
        %v1577 = vld [vmem:[#allocation14 + $0xf8] sm:$0xff]
        %v1578 = vld [vmem:[#allocation14 + $0x100] sm:$0xff]
        %v1579 = vld [vmem:[#allocation14 + $0x108] sm:$0xff]
        %v1580 = vld [vmem:[#allocation14 + $0x110] sm:$0xff]
        %v1581 = vld [vmem:[#allocation14 + $0x118] sm:$0xff]
        %v1582 = vld [vmem:[#allocation14 + $0x120] sm:$0xff]
        %v1583 = vld [vmem:[#allocation14 + $0x128] sm:$0xff]
        %v1584 = vld [vmem:[#allocation14 + $0x130] sm:$0xff]
        %v1585 = vld [vmem:[#allocation14 + $0x138] sm:$0xff]
        %v1586 = vld [vmem:[#allocation14 + $0x140] sm:$0xff]
        %v1587 = vld [vmem:[#allocation14 + $0x148] sm:$0xff]
        %v1588 = vld [vmem:[#allocation14 + $0x150] sm:$0xff]
        %v1589 = vld [vmem:[#allocation14 + $0x158] sm:$0xff]
        %v1590 = vld [vmem:[#allocation14 + $0x160] sm:$0xff]
        %v1591 = vld [vmem:[#allocation14 + $0x168] sm:$0xff]
        %v1592 = vld [vmem:[#allocation14 + $0x170] sm:$0xff]
        %v1593 = vld [vmem:[#allocation14 + $0x178] sm:$0xff]
        %v1594 = vld [vmem:[#allocation14 + $0x180] sm:$0xff]
        %v1595 = vld [vmem:[#allocation14 + $0x188] sm:$0xff]
        %v1596 = vld [vmem:[#allocation14 + $0x190] sm:$0xff]
        %v1597 = vld [vmem:[#allocation14 + $0x198] sm:$0xff]
        %v1598 = vld [vmem:[#allocation14 + $0x1a0] sm:$0xff]
        %v1599 = vld [vmem:[#allocation14 + $0x1a8] sm:$0xff]
        %v1600 = vld [vmem:[#allocation14 + $0x1b0] sm:$0xff]
        %v1601 = vld [vmem:[#allocation14 + $0x1b8] sm:$0xff]
        %v1602 = vld [vmem:[#allocation14 + $0x1c0] sm:$0xff]
        %v1603 = vld [vmem:[#allocation14 + $0x1c8] sm:$0xff]
        %v1604 = vld [vmem:[#allocation14 + $0x1d0] sm:$0xff]
        %v1605 = vld [vmem:[#allocation14 + $0x1d8] sm:$0xff]
        %v1606 = vld [vmem:[#allocation14 + $0x1e0] sm:$0xff]
        %v1607 = vld [vmem:[#allocation14 + $0x1e8] sm:$0xff]
        %v1608 = vld [vmem:[#allocation14 + $0x1f0] sm:$0xff]
        %v1609 = vld [vmem:[#allocation14 + $0x1f8] sm:$0xff]
        %1610 = vmatprep.subr.mxu0 %v1547
        %1611 = vmatpush1.msra.mxu0 %v1546
        %1612 = vmatprep.subr.mxu0 %v1549
        %1613 = vmatpush1.msra.mxu0 %v1548
        %1614 = vmatprep.subr.mxu0 %v1551
        %1615 = vmatpush1.msra.mxu0 %v1550
        %1616 = vmatprep.subr.mxu0 %v1553
        %1617 = vmatpush1.msra.mxu0 %v1552
        %1618 = vmatprep.subr.mxu0 %v1555
        %1619 = vmatpush1.msra.mxu0 %v1554
        %1620 = vmatprep.subr.mxu0 %v1557
        %1621 = vmatpush1.msra.mxu0 %v1556
        %1622 = vmatprep.subr.mxu0 %v1559
        %1623 = vmatpush1.msra.mxu0 %v1558
        %1624 = vmatprep.subr.mxu0 %v1561
        %1625 = vmatpush1.msra.mxu0 %v1560
        %1626 = vmatprep.subr.mxu0 %v1563
        %1627 = vmatpush1.msra.mxu0 %v1562
        %1628 = vmatprep.subr.mxu0 %v1565
        %1629 = vmatpush1.msra.mxu0 %v1564
        %1630 = vmatprep.subr.mxu0 %v1567
        %1631 = vmatpush1.msra.mxu0 %v1566
        %1632 = vmatprep.subr.mxu0 %v1569
        %1633 = vmatpush1.msra.mxu0 %v1568
        %1634 = vmatprep.subr.mxu0 %v1571
        %1635 = vmatpush1.msra.mxu0 %v1570
        %1636 = vmatprep.subr.mxu0 %v1573
        %1637 = vmatpush1.msra.mxu0 %v1572
        %1638 = vmatprep.subr.mxu0 %v1575
        %1639 = vmatpush1.msra.mxu0 %v1574
        %1640 = vmatprep.subr.mxu0 %v1577
        %1641 = vmatpush1.msra.mxu0 %v1576
        %1642 = vmatprep.subr.mxu0 %v1579
        %1643 = vmatpush1.msra.mxu0 %v1578
        %1644 = vmatprep.subr.mxu0 %v1581
        %1645 = vmatpush1.msra.mxu0 %v1580
        %1646 = vmatprep.subr.mxu0 %v1583
        %1647 = vmatpush1.msra.mxu0 %v1582
        %1648 = vmatprep.subr.mxu0 %v1585
        %1649 = vmatpush1.msra.mxu0 %v1584
        %1650 = vmatprep.subr.mxu0 %v1587
        %1651 = vmatpush1.msra.mxu0 %v1586
        %1652 = vmatprep.subr.mxu0 %v1589
        %1653 = vmatpush1.msra.mxu0 %v1588
        %1654 = vmatprep.subr.mxu0 %v1591
        %1655 = vmatpush1.msra.mxu0 %v1590
        %1656 = vmatprep.subr.mxu0 %v1593
        %1657 = vmatpush1.msra.mxu0 %v1592
        %1658 = vmatprep.subr.mxu0 %v1595
        %1659 = vmatpush1.msra.mxu0 %v1594
        %1660 = vmatprep.subr.mxu0 %v1597
        %1661 = vmatpush1.msra.mxu0 %v1596
        %1662 = vmatprep.subr.mxu0 %v1599
        %1663 = vmatpush1.msra.mxu0 %v1598
        %1664 = vmatprep.subr.mxu0 %v1601
        %1665 = vmatpush1.msra.mxu0 %v1600
        %1666 = vmatprep.subr.mxu0 %v1603
        %1667 = vmatpush1.msra.mxu0 %v1602
        %1668 = vmatprep.subr.mxu0 %v1605
        %1669 = vmatpush1.msra.mxu0 %v1604
        %1670 = vmatprep.subr.mxu0 %v1607
        %1671 = vmatpush1.msra.mxu0 %v1606
        %1672 = vmatprep.subr.mxu0 %v1609
        %1673 = vmatpush1.msra.mxu0 %v1608
        %1674 = vmatprep.mubr.f32.mxu0 %v1543
        %1675 = vmatmul.mubr.f32.gmra.mrb[0].mxu0 %v1542
        %v1676 = vpop.f32.mrb[0].mxu0
        %v1677 = vadd.f32 0.0, %v1676
        %v1678 = vpop.f32.mrb[0].mxu0
        %v1679 = vadd.f32 0.0, %v1678
        %1680 = vmatprep.mubr.f32.mxu0 %v1545
        %1681 = vmatmul.mubr.f32.gmra.mrb[0].mxu0 %v1544
        %v1682 = vpop.f32.mrb[0].mxu0
        %v1683 = vadd.f32 0.0, %v1682
        %v1684 = vpop.f32.mrb[0].mxu0
        %v1685 = vadd.f32 0.0, %v1684
        %1686 = vdwg.mxu0
        %v1687 = vadd.f32 %v1677, %v1683
        %v1688 = vrot.slane %v1687, 4
        %v1689 = vadd.f32 %v1687, %v1688
        %v1690 = vrot.slane %v1689, 2
        %v1691 = vadd.f32 %v1689, %v1690
        %v1692 = vrot.slane %v1691, 1
        %v1693 = vadd.f32 %v1691, %v1692
        %v1694 = vadd.f32 %v1679, %v1685
        %v1695 = vrot.slane %v1694, 4
        %v1696 = vadd.f32 %v1694, %v1695
        %v1697 = vrot.slane %v1696, 2
        %v1698 = vadd.f32 %v1696, %v1697
        %v1699 = vrot.slane %v1698, 1
        %v1700 = vadd.f32 %v1698, %v1699
        %1701 = vmatprep.subr.mxu0 %v590
        %1702 = vmatpush1.msra.mxu0 %v589
        %1703 = vmatprep.subr.mxu0 %v592
        %1704 = vmatpush1.msra.mxu0 %v591
        %1705 = vmatprep.subr.mxu0 %v594
        %1706 = vmatpush1.msra.mxu0 %v593
        %1707 = vmatprep.subr.mxu0 %v596
        %1708 = vmatpush1.msra.mxu0 %v595
        %1709 = vmatprep.subr.mxu0 %v598
        %1710 = vmatpush1.msra.mxu0 %v597
        %1711 = vmatprep.subr.mxu0 %v600
        %1712 = vmatpush1.msra.mxu0 %v599
        %1713 = vmatprep.subr.mxu0 %v602
        %1714 = vmatpush1.msra.mxu0 %v601
        %1715 = vmatprep.subr.mxu0 %v604
        %1716 = vmatpush1.msra.mxu0 %v603
        %1717 = vmatprep.subr.mxu0 %v606
        %1718 = vmatpush1.msra.mxu0 %v605
        %1719 = vmatprep.subr.mxu0 %v608
        %1720 = vmatpush1.msra.mxu0 %v607
        %1721 = vmatprep.subr.mxu0 %v610
        %1722 = vmatpush1.msra.mxu0 %v609
        %1723 = vmatprep.subr.mxu0 %v612
        %1724 = vmatpush1.msra.mxu0 %v611
        %1725 = vmatprep.subr.mxu0 %v614
        %1726 = vmatpush1.msra.mxu0 %v613
        %1727 = vmatprep.subr.mxu0 %v616
        %1728 = vmatpush1.msra.mxu0 %v615
        %1729 = vmatprep.subr.mxu0 %v618
        %1730 = vmatpush1.msra.mxu0 %v617
        %1731 = vmatprep.subr.mxu0 %v620
        %1732 = vmatpush1.msra.mxu0 %v619
        %1733 = vmatprep.subr.mxu0 %v622
        %1734 = vmatpush1.msra.mxu0 %v621
        %1735 = vmatprep.subr.mxu0 %v624
        %1736 = vmatpush1.msra.mxu0 %v623
        %1737 = vmatprep.subr.mxu0 %v626
        %1738 = vmatpush1.msra.mxu0 %v625
        %1739 = vmatprep.subr.mxu0 %v628
        %1740 = vmatpush1.msra.mxu0 %v627
        %1741 = vmatprep.subr.mxu0 %v630
        %1742 = vmatpush1.msra.mxu0 %v629
        %1743 = vmatprep.subr.mxu0 %v632
        %1744 = vmatpush1.msra.mxu0 %v631
        %1745 = vmatprep.subr.mxu0 %v634
        %1746 = vmatpush1.msra.mxu0 %v633
        %1747 = vmatprep.subr.mxu0 %v636
        %1748 = vmatpush1.msra.mxu0 %v635
        %1749 = vmatprep.subr.mxu0 %v638
        %1750 = vmatpush1.msra.mxu0 %v637
        %1751 = vmatprep.subr.mxu0 %v640
        %1752 = vmatpush1.msra.mxu0 %v639
        %1753 = vmatprep.subr.mxu0 %v642
        %1754 = vmatpush1.msra.mxu0 %v641
        %1755 = vmatprep.subr.mxu0 %v644
        %1756 = vmatpush1.msra.mxu0 %v643
        %1757 = vmatprep.subr.mxu0 %v646
        %1758 = vmatpush1.msra.mxu0 %v645
        %1759 = vmatprep.subr.mxu0 %v648
        %1760 = vmatpush1.msra.mxu0 %v647
        %1761 = vmatprep.subr.mxu0 %v650
        %1762 = vmatpush1.msra.mxu0 %v649
        %1763 = vmatprep.subr.mxu0 %v652
        %1764 = vmatpush1.msra.mxu0 %v651
        %1765 = vmatprep.mubr.f32.mxu0 %v1700
        %1766 = vmatmul.mubr.f32.gmra.mrb[0].mxu0 %v1693
        %v1767 = vpop.f32.mrb[0].mxu0
        %v1768 = vadd.f32 0.0, %v1767
        %v1769 = vpop.f32.mrb[0].mxu0
        %v1770 = vadd.f32 0.0, %v1769
        %1771 = vdwg.mxu0
        %v1772 = vlaneseq
        %v1773 = vshrl.u32 %v1772, 7
        %v1774 = vsub.s32 0, %v1773
        %v1775 = vrot.slane %v1768, %v1774
        %v1776 = vlaneseq
        %v1777 = vshrl.u32 %v1776, 7
        %v1778 = vsub.s32 0, %v1777
        %v1779 = vrot.slane %v1770, %v1778
        %v1780 = vsub.f32 %v1677, %v1775
        %v1781 = vsub.f32 %v1679, %v1779
        %v1782 = vsub.f32 %v1683, %v1775
        %v1783 = vsub.f32 %v1685, %v1779
        %v1784 = vmul.f32 %v1780, %v1780
        %v1785 = vmul.f32 %v1781, %v1781
        %v1786 = vmul.f32 %v1782, %v1782
        %v1787 = vmul.f32 %v1783, %v1783
        %v1788 = vadd.f32 %v1784, %v1786
        %v1789 = vrot.slane %v1788, 4
        %v1790 = vadd.f32 %v1788, %v1789
        %v1791 = vrot.slane %v1790, 2
        %v1792 = vadd.f32 %v1790, %v1791
        %v1793 = vrot.slane %v1792, 1
        %v1794 = vadd.f32 %v1792, %v1793
        %v1795 = vadd.f32 %v1785, %v1787
        %v1796 = vrot.slane %v1795, 4
        %v1797 = vadd.f32 %v1795, %v1796
        %v1798 = vrot.slane %v1797, 2
        %v1799 = vadd.f32 %v1797, %v1798
        %v1800 = vrot.slane %v1799, 1
        %v1801 = vadd.f32 %v1799, %v1800
        %1802 = vmatprep.subr.mxu0 %v590
        %1803 = vmatpush1.msra.mxu0 %v589
        %1804 = vmatprep.subr.mxu0 %v592
        %1805 = vmatpush1.msra.mxu0 %v591
        %1806 = vmatprep.subr.mxu0 %v594
        %1807 = vmatpush1.msra.mxu0 %v593
        %1808 = vmatprep.subr.mxu0 %v596
        %1809 = vmatpush1.msra.mxu0 %v595
        %1810 = vmatprep.subr.mxu0 %v598
        %1811 = vmatpush1.msra.mxu0 %v597
        %1812 = vmatprep.subr.mxu0 %v600
        %1813 = vmatpush1.msra.mxu0 %v599
        %1814 = vmatprep.subr.mxu0 %v602
        %1815 = vmatpush1.msra.mxu0 %v601
        %1816 = vmatprep.subr.mxu0 %v604
        %1817 = vmatpush1.msra.mxu0 %v603
        %1818 = vmatprep.subr.mxu0 %v606
        %1819 = vmatpush1.msra.mxu0 %v605
        %1820 = vmatprep.subr.mxu0 %v608
        %1821 = vmatpush1.msra.mxu0 %v607
        %1822 = vmatprep.subr.mxu0 %v610
        %1823 = vmatpush1.msra.mxu0 %v609
        %1824 = vmatprep.subr.mxu0 %v612
        %1825 = vmatpush1.msra.mxu0 %v611
        %1826 = vmatprep.subr.mxu0 %v614
        %1827 = vmatpush1.msra.mxu0 %v613
        %1828 = vmatprep.subr.mxu0 %v616
        %1829 = vmatpush1.msra.mxu0 %v615
        %1830 = vmatprep.subr.mxu0 %v618
        %1831 = vmatpush1.msra.mxu0 %v617
        %1832 = vmatprep.subr.mxu0 %v620
        %1833 = vmatpush1.msra.mxu0 %v619
        %1834 = vmatprep.subr.mxu0 %v622
        %1835 = vmatpush1.msra.mxu0 %v621
        %1836 = vmatprep.subr.mxu0 %v624
        %1837 = vmatpush1.msra.mxu0 %v623
        %1838 = vmatprep.subr.mxu0 %v626
        %1839 = vmatpush1.msra.mxu0 %v625
        %1840 = vmatprep.subr.mxu0 %v628
        %1841 = vmatpush1.msra.mxu0 %v627
        %1842 = vmatprep.subr.mxu0 %v630
        %1843 = vmatpush1.msra.mxu0 %v629
        %1844 = vmatprep.subr.mxu0 %v632
        %1845 = vmatpush1.msra.mxu0 %v631
        %1846 = vmatprep.subr.mxu0 %v634
        %1847 = vmatpush1.msra.mxu0 %v633
        %1848 = vmatprep.subr.mxu0 %v636
        %1849 = vmatpush1.msra.mxu0 %v635
        %1850 = vmatprep.subr.mxu0 %v638
        %1851 = vmatpush1.msra.mxu0 %v637
        %1852 = vmatprep.subr.mxu0 %v640
        %1853 = vmatpush1.msra.mxu0 %v639
        %1854 = vmatprep.subr.mxu0 %v642
        %1855 = vmatpush1.msra.mxu0 %v641
        %1856 = vmatprep.subr.mxu0 %v644
        %1857 = vmatpush1.msra.mxu0 %v643
        %1858 = vmatprep.subr.mxu0 %v646
        %1859 = vmatpush1.msra.mxu0 %v645
        %1860 = vmatprep.subr.mxu0 %v648
        %1861 = vmatpush1.msra.mxu0 %v647
        %1862 = vmatprep.subr.mxu0 %v650
        %1863 = vmatpush1.msra.mxu0 %v649
        %1864 = vmatprep.subr.mxu0 %v652
        %1865 = vmatpush1.msra.mxu0 %v651
        %1866 = vmatprep.mubr.f32.mxu0 %v1801
        %1867 = vmatmul.mubr.f32.gmra.mrb[0].mxu0 %v1794
        %v1868 = vpop.f32.mrb[0].mxu0
        %v1869 = vadd.f32 0.0, %v1868
        %v1870 = vpop.f32.mrb[0].mxu0
        %v1871 = vadd.f32 0.0, %v1870
        %1872 = vdwg.mxu0
        %v1873 = vadd.f32 %v1869, 0.001
        %v1874 = vadd.f32 %v1871, 0.001
        %v1875 = vrsqrt.pop %v1873
        %v1876 = vrsqrt.pop %v1874
        %v1877 = vlaneseq
        %v1878 = vshrl.u32 %v1877, 7
        %v1879 = vsub.s32 0, %v1878
        %v1880 = vrot.slane %v1875, %v1879
        %v1881 = vlaneseq
        %v1882 = vshrl.u32 %v1881, 7
        %v1883 = vsub.s32 0, %v1882
        %v1884 = vrot.slane %v1876, %v1883
        %v1885 = vmul.f32 %v1780, %v1880
        %v1886 = vmul.f32 %v1781, %v1884
        %v1887 = vmul.f32 %v1782, %v1880
        %v1888 = vmul.f32 %v1783, %v1884
        %v1889 = vlaneseq
        %v1890 = vshrl.u32 %v1889, 7
        %v1891 = vsub.s32 0, %v1890
        %v1892 = vrot.slane %v432, %v1891
        %v1893 = vlaneseq
        %v1894 = vshrl.u32 %v1893, 7
        %v1895 = vsub.s32 0, %v1894
        %v1896 = vrot.slane %v433, %v1895
        %v1897 = vmul.f32 %v1885, %v1892
        %v1898 = vmul.f32 %v1886, %v1896
        %v1899 = vmul.f32 %v1887, %v1892
        %v1900 = vmul.f32 %v1888, %v1896
        %v1901 = vlaneseq
        %v1902 = vshrl.u32 %v1901, 7
        %v1903 = vsub.s32 1, %v1902
        %v1904 = vrot.slane %v432, %v1903
        %v1905 = vlaneseq
        %v1906 = vshrl.u32 %v1905, 7
        %v1907 = vsub.s32 1, %v1906
        %v1908 = vrot.slane %v433, %v1907
        %v1909 = vadd.f32 %v1897, %v1904
        %v1910 = vadd.f32 %v1898, %v1908
        %v1911 = vadd.f32 %v1899, %v1904
        %v1912 = vadd.f32 %v1900, %v1908
        %v1913 = vmax.f32 %v1909, 0.0
        %v1914 = vmax.f32 %v1910, 0.0
        %v1915 = vmax.f32 %v1911, 0.0
        %v1916 = vmax.f32 %v1912, 0.0
        %v1917 = vadd.f32 %v1913, %v426
        %v1918 = vadd.f32 %v1914, %v427
        %v1919 = vadd.f32 %v1915, %v428
        %v1920 = vadd.f32 %v1916, %v429
        %1921 = vst [vmem:[%s425] sm:$0xff] %v1917
        %1922 = vst [vmem:[%s425 + $0x8] sm:$0xff] %v1918
        %1923 = vst [vmem:[%s425 + $0x10] sm:$0xff] %v1919
        %1924 = vst [vmem:[%s425 + $0x18] sm:$0xff] %v1920
        %s1925 = sand.u32 %s210, 1
        %s1926 = scalar_lea.sflag [#allocation4], %s1925
        %s1927 = sand.u32 %s210, 1
        %s1928 = smul.addr %s1927, 32
        %s1929 = scalar_lea.vmem [#allocation16], %s1928
        // Predicated region
        $region85: #{tpu_custom_call.1} parent=51 // pred_check
          %p1930 = pneg %p220
        $region86: #{tpu_custom_call.1} parent=51 // pred_check_branch
          %1932 = sbr.rel (%p1930) target = $region88
        $region87: #{tpu_custom_call.1} parent=51 // pred_region
          %s1934 = ssub.s32 512, 512
          %1935 = vsyncadd %s1926, %s1934
          %s1936 = smul.addr %s29, 4
          %s1937 = smul.addr %s1936, 128
          %s1938 = scalar_lea.hbm %s8, %s1937
          %s1939 = sshll.u32 %s1929, 4
          %s1940 = int_to_ptr.vmem [resolvable:$true] %s1939
          %1945 = dma.vmem_to_hbm [thread:$0]  %s1940, 512, %s1938, %s1926, 256, 256, 16
        $region88: #{tpu_custom_call.1} parent=51 // pred_fallthru
          _
      $region52: #{tpu_custom_call.1} parent=5 // pred_fallthru
        _
      %p1946 = scmp.le.s32.totalorder 2, %s24
      // Predicated region
      $region89: #{tpu_custom_call.1} parent=5 // pred_check
        %p1947 = pneg %p1946
      $region90: #{tpu_custom_call.1} parent=5 // pred_check_branch
        %1949 = sbr.rel (%p1947) target = $region92
      $region91: #{tpu_custom_call.1} parent=5 // pred_region
        %s1950 = ssub.s32 %s24, 2
        // Predicated region
        $region93: #{tpu_custom_call.1} parent=91 // pred_check
          %p1951 = pneg %p226
        $region94: #{tpu_custom_call.1} parent=91 // pred_check_branch
          %1953 = sbr.rel (%p1951) target = $region96
        $region95: #{tpu_custom_call.1} parent=91 // pred_region
          %s1954 = sand.u32 %s211, 1
          %s1955 = scalar_lea.sflag [#allocation4], %s1954
          %s1956 = sand.u32 %s211, 1
          %s1957 = smul.addr %s1956, 32
          %s1958 = scalar_lea.vmem [#allocation16], %s1957
          %1959 = dma.done %s1955, 512
        $region96: #{tpu_custom_call.1} parent=91 // pred_fallthru
          _
      $region92: #{tpu_custom_call.1} parent=5 // pred_fallthru
        _
    $region6: #{tpu_custom_call.1} parent=1 // loop_footer
      %s28 = sadd.s32 1, %s24
    $region7: #{tpu_custom_call.1} parent=1 // loop_footer_branch
      %23 = sbr.rel target = $region3
    $region8: #{tpu_custom_call.1} parent=1 // loop_exit
      _
    %1960 = vsyncpa [#allocation3], 1
    %s1961 = scalar_lea.sflag [#allocation3], 1
    %1962 = vsyncpa %s1961, 1
    %1963 = vsyncpa [#allocation6], 1
    %1964 = vsyncpa [#allocation9], 1
    %1965 = vsyncpa [#allocation12], 1
    %1966 = vsyncpa [#allocation15], 1
    %1967 = vsyncpa [#allocation4], 1
    %s1968 = scalar_lea.sflag [#allocation4], 1
    %1969 = vsyncpa %s1968, 1

</llo_original>
